<compile_context>
chip_gen: v7x
topology: tpu7x:2x2x1
jax: 0.10.0
libtpu: 0.0.40
codegen_flags: <defaults>
</compile_context>

<pallas_src>
import jax
import jax.numpy as jnp
from jax import lax
from jax.experimental import pallas as pl
from jax.experimental.pallas import tpu as pltpu

LANE = 128
_VMEM_BUDGET = 24 * 1024 * 1024   # double-buffered input tiles + scratch working set
_VMEM_LIMIT = 40 * 1024 * 1024    # scoped VMEM limit (safe on v5e/v6e/v7x)


def _make_kernel(K, C, tile_s, s_valid, t_per_half):
    def kernel(*refs):
        pred_refs = refs[:K]
        target_ref, pms_ref, mask_ref, pwm_ref, wm_ref = refs[K:K + 5]
        pix_out, att_out, wm_out = refs[K + 5:K + 8]
        pix_acc, att_acc, wm_acc = refs[K + 8:K + 11]

        p = pl.program_id(0)
        t = pl.program_id(2)
        nt = pl.num_programs(2)

        @pl.when(t == 0)
        def _init():
            pix_acc[...] = jnp.zeros_like(pix_acc)
            att_acc[...] = jnp.zeros_like(att_acc)
            wm_acc[...] = jnp.zeros_like(wm_acc)

        # Validity mask for the ragged last HW tile (and fully out-of-range tiles of
        # the second parallel half).  OOB rows of a partial block hold garbage, so we
        # select (not multiply) to keep NaN/Inf out of the accumulators.
        t_global = p * t_per_half + t
        rows = lax.broadcasted_iota(jnp.int32, (tile_s, LANE), 0) + t_global * tile_s
        valid = rows < s_valid

        # Hoisted (tile_s, 128) mask tiles, reused across the whole (c, k) unroll.
        pms = pms_ref[0].astype(jnp.float32)
        msk = mask_ref[0].astype(jnp.float32)

        # att_loss: BCE(pred_ms, mask); torch clamps the log terms at -100.
        logp = jnp.maximum(jnp.log(pms), -100.0)
        log1mp = jnp.maximum(jnp.log(1.0 - pms), -100.0)
        att_elem = -(msk * logp + (1.0 - msk) * log1mp)
        att_acc[...] += jnp.where(valid, att_elem, 0.0)

        pix_part = jnp.zeros((tile_s, LANE), jnp.float32)
        wm_part = jnp.zeros((tile_s, LANE), jnp.float32)
        for c in range(C):                              # static unroll; one tile live per operand
            tc = target_ref[c].astype(jnp.float32)
            tm_c = tc * msk                             # target * mask   (shared across k)
            mt_c = tc * pms                             # pred_ms * target (shared across k)
            for k in range(K):
                pm = pred_refs[k][c].astype(jnp.float32) * pms
                d = pm - tm_c                           # MSE(pred*pms, target*mask)
                # recov - target == pred*pms - pms*target
                # TODO(synk): norm_func / denorm_func default to None in the module; identity assumed.
                pix_part += d * d + jnp.abs(pm - mt_c)
            dw = pwm_ref[c].astype(jnp.float32) * pms - wm_ref[c].astype(jnp.float32) * msk
            wm_part += dw * dw                          # MSE(pred_wms*pms, wm*mask)
        pix_acc[...] += jnp.where(valid, pix_part, 0.0)
        wm_acc[...] += jnp.where(valid, wm_part, 0.0)

        # Single cross-lane reduction per (half, batch) item, only at the last HW tile.
        @pl.when(t == nt - 1)
        def _finalize():
            pix_out[...] = jnp.sum(pix_acc[...], keepdims=True)
            att_out[...] = jnp.sum(att_acc[...], keepdims=True)
            wm_out[...] = jnp.sum(wm_acc[...], keepdims=True)

    return kernel


def _prep(x, n, c, hw, s_arr, pad_value):
    """(n, c, H, W) -> (n, c, s_arr, 128).  Pads the flattened HW axis only when HW is
    not a multiple of 128 (or has fewer than 8 rows); otherwise this is a free reshape.
    Pad values (0 for images, 1 for masks) contribute exactly 0 to every loss term."""
    x = x.reshape(n, c, hw)
    pad = s_arr * LANE - hw
    if pad:
        x = jnp.pad(x, ((0, 0), (0, 0), (0, pad)), constant_values=pad_value)
    return x.reshape(n, c, s_arr, LANE)


def losses_forward(pred_ims, target, pred_ms, mask, pred_wms, wm, *, max_tile_s=1024):
    """JAX/Pallas equivalent of Losses.forward for the default (unmasked, l2) config."""
    if not isinstance(pred_ims, (list, tuple)):
        pred_ims = [pred_ims]
    pred_ims = list(pred_ims)
    K = len(pred_ims)
    N, C, H, W = target.shape
    HW = H * W

    S = -(-HW // LANE)            # valid sublane rows once HW is viewed as (rows, 128)
    S_arr = max(S, 8)             # array rows (tiny images padded up to one (8,128) tile)

    # VMEM-budget-driven tile size: double-buffered input tiles + three f32 scratch rows.
    row_bytes = (K * C + 3 * C + 2) * LANE * 4
    tile_s = _VMEM_BUDGET // (2 * row_bytes + 3 * LANE * 4)
    tile_s = max(8, (min(tile_s, max_tile_s, S_arr) // 8) * 8)
    T = -(-S_arr // tile_s)

    # v7x has 2 TensorCores: guarantee a parallel axis of extent >= 2 even when N == 1
    # by splitting the HW-tile axis into two parallel halves (partial sums per half).
    P = 2 if (N == 1 and T >= 2) else 1
    Tp = -(-T // P)

    # Predictions stay as K separate inputs (no host-side stack).  Input dtype is
    # preserved through the DMA (bf16 stays bf16); the kernel casts on load.
    pred_r = [_prep(p, N, C, HW, S_arr, 0.0) for p in pred_ims]
    target_r = _prep(target, N, C, HW, S_arr, 0.0)
    pms_r = _prep(pred_ms, N, 1, HW, S_arr, 1.0)
    mask_r = _prep(mask, N, 1, HW, S_arr, 1.0)
    pwm_r = _prep(pred_wms, N, C, HW, S_arr, 0.0)
    wm_r = _prep(wm, N, C, HW, S_arr, 0.0)

    def img_idx(p, n, t):
        # Clamp so fully out-of-range tiles of the second half re-read the last valid
        # block; their contribution is masked out in-kernel via the row-validity mask.
        return (n, 0, jnp.minimum(p * Tp + t, T - 1), 0)

    img_spec = pl.BlockSpec((None, C, tile_s, LANE), img_idx)
    msk_spec = pl.BlockSpec((None, 1, tile_s, LANE), img_idx)
    out_spec = pl.BlockSpec((None, 1, 1), lambda p, n, t: (p * N + n, 0, 0))

    inputs = (*pred_r, target_r, pms_r, mask_r, pwm_r, wm_r)
    in_bytes = sum(int(a.size) * a.dtype.itemsize for a in inputs)
    cost = pl.CostEstimate(
        flops=int(N * C * HW * (7 * K + 7) + N * HW * 10),
        transcendentals=int(2 * N * HW),
        bytes_accessed=int(in_bytes + 3 * P * N * 4),
    )

    pix_n, att_n, wm_n = pl.pallas_call(
        _make_kernel(K, C, tile_s, S, Tp),
        out_shape=(jax.ShapeDtypeStruct((P * N, 1, 1), jnp.float32),) * 3,
        grid_spec=pltpu.PrefetchScalarGridSpec(
            num_scalar_prefetch=0,
            grid=(P, N, Tp),
            in_specs=[img_spec] * K + [img_spec, msk_spec, msk_spec, img_spec, img_spec],
            out_specs=[out_spec] * 3,
            scratch_shapes=[pltpu.VMEM((tile_s, LANE), jnp.float32)] * 3,
        ),
        compiler_params=pltpu.CompilerParams(
            dimension_semantics=("parallel", "parallel", "arbitrary"),
            vmem_limit_bytes=_VMEM_LIMIT),
        cost_estimate=cost,
    )(*inputs)

    inv_img_cnt = 1.0 / float(N * C * HW)   # mean denominator for image-sized losses
    inv_mask_cnt = 1.0 / float(N * HW)      # mean denominator for mask-sized BCE

    pixel_loss = jnp.sum(pix_n) * inv_img_cnt
    att_loss = jnp.sum(att_n) * inv_mask_cnt
    wm_loss = jnp.sum(wm_n) * inv_img_cnt
    vgg_loss = jnp.float32(0.0)   # args.style_loss == 0
    ssim_loss = jnp.float32(0.0)  # args.ssim_loss == 0
    return pixel_loss, att_loss, wm_loss, vgg_loss, ssim_loss


def _reference(pred_ims, target, pred_ms, mask, pred_wms, wm):
    """Pure-JAX reference of the same forward (identity norm/denorm)."""
    if not isinstance(pred_ims, (list, tuple)):
        pred_ims = [pred_ims]
    mse = lambda a, b: jnp.mean((a - b) ** 2)
    l1 = lambda a, b: jnp.mean(jnp.abs(a - b))
    pixel = 0.0
    for p in pred_ims:
        pixel += mse(p * pred_ms, target * mask)
        recov = p * pred_ms + (1.0 - pred_ms) * target
        pixel += l1(recov, target)
    logp = jnp.maximum(jnp.log(pred_ms), -100.0)
    log1mp = jnp.maximum(jnp.log(1.0 - pred_ms), -100.0)
    att = jnp.mean(-(mask * logp + (1.0 - mask) * log1mp))
    wml = mse(pred_wms * pred_ms, wm * mask)
    return pixel, att, wml


if __name__ == "__main__":
    key = jax.random.PRNGKey(0)
    ks = jax.random.split(key, 13)

    # --- Case 1: K = 2 predictions, batch 2, ragged HW (20*20 = 400 -> lane-pad path) ---
    N, C, H, W = 2, 3, 20, 20
    pred_im_a = jax.random.normal(ks[0], (N, C, H, W), jnp.float32)
    pred_im_b = jax.random.normal(ks[1], (N, C, H, W), jnp.float32)
    target = jax.random.normal(ks[2], (N, C, H, W), jnp.float32)
    pred_ms = jax.random.uniform(ks[3], (N, 1, H, W), jnp.float32, minval=0.05, maxval=0.95)
    mask = jnp.round(jax.random.uniform(ks[4], (N, 1, H, W), jnp.float32))
    pred_wms = jax.random.normal(ks[5], (N, C, H, W), jnp.float32)
    wm = jax.random.normal(ks[6], (N, C, H, W), jnp.float32)
    pred_ims = [pred_im_a, pred_im_b]

    out = losses_forward(pred_ims, target, pred_ms, mask, pred_wms, wm)
    out = jax.block_until_ready(out)
    pixel_loss, att_loss, wm_loss, vgg_loss, ssim_loss = out
    ref_pixel, ref_att, ref_wm = _reference(pred_ims, target, pred_ms, mask, pred_wms, wm)
    assert jnp.allclose(pixel_loss, ref_pixel, rtol=1e-3, atol=1e-3)
    assert jnp.allclose(att_loss, ref_att, rtol=1e-3, atol=1e-3)
    assert jnp.allclose(wm_loss, ref_wm, rtol=1e-3, atol=1e-3)
    assert float(vgg_loss) == 0.0 and float(ssim_loss) == 0.0

    # --- Case 2: batch 1 -> HW-tile axis split into 2 parallel halves (v7x dual-TC),
    #     with a ragged last tile and a fully out-of-range clamped tile (max_tile_s=8). ---
    N2, C2, H2, W2 = 1, 3, 48, 48
    pred_im2 = jax.random.normal(ks[7], (N2, C2, H2, W2), jnp.float32)
    target2 = jax.random.normal(ks[8], (N2, C2, H2, W2), jnp.float32)
    pred_ms2 = jax.random.uniform(ks[9], (N2, 1, H2, W2), jnp.float32, minval=0.05, maxval=0.95)
    mask2 = jnp.round(jax.random.uniform(ks[10], (N2, 1, H2, W2), jnp.float32))
    pred_wms2 = jax.random.normal(ks[11], (N2, C2, H2, W2), jnp.float32)
    wm2 = jax.random.normal(ks[12], (N2, C2, H2, W2), jnp.float32)

    out2 = losses_forward(pred_im2, target2, pred_ms2, mask2, pred_wms2, wm2, max_tile_s=8)
    out2 = jax.block_until_ready(out2)
    ref2 = _reference(pred_im2, target2, pred_ms2, mask2, pred_wms2, wm2)
    assert jnp.allclose(out2[0], ref2[0], rtol=1e-3, atol=1e-3)
    assert jnp.allclose(out2[1], ref2[1], rtol=1e-3, atol=1e-3)
    assert jnp.allclose(out2[2], ref2[2], rtol=1e-3, atol=1e-3)

    print("KERNEL_OK")
</pallas_src>

<mosaic_0001>
module attributes {stable_mosaic.version = 11 : i64} {
  func.func @kernel(%arg0: i32, %arg1: i32, %arg2: i32, %arg3: memref<1x3x8x128xf32, #tpu.memory_space<vmem>>, %arg4: memref<1x3x8x128xf32, #tpu.memory_space<vmem>>, %arg5: memref<1x3x8x128xf32, #tpu.memory_space<vmem>>, %arg6: memref<1x1x8x128xf32, #tpu.memory_space<vmem>>, %arg7: memref<1x1x8x128xf32, #tpu.memory_space<vmem>>, %arg8: memref<1x3x8x128xf32, #tpu.memory_space<vmem>>, %arg9: memref<1x3x8x128xf32, #tpu.memory_space<vmem>>, %arg10: memref<1x1x1xf32, #tpu.memory_space<vmem>>, %arg11: memref<1x1x1xf32, #tpu.memory_space<vmem>>, %arg12: memref<1x1x1xf32, #tpu.memory_space<vmem>>, %arg13: memref<8x128xf32, #tpu.memory_space<vmem>>, %arg14: memref<8x128xf32, #tpu.memory_space<vmem>>, %arg15: memref<8x128xf32, #tpu.memory_space<vmem>>) attributes {dimension_semantics = [#tpu.dimension_semantics<parallel>, #tpu.dimension_semantics<parallel>, #tpu.dimension_semantics<arbitrary>], iteration_bounds = array<i64: 1, 2, 1>, scalar_prefetch = 0 : i64, scratch_operands = 3 : i64, tpu.core_type = #tpu.core_type<tc>, window_params = [{transform_indices = @transform_0, window_bounds = array<i64: 1, 3, 8, 128>}, {transform_indices = @transform_1, window_bounds = array<i64: 1, 3, 8, 128>}, {transform_indices = @transform_2, window_bounds = array<i64: 1, 3, 8, 128>}, {transform_indices = @transform_3, window_bounds = array<i64: 1, 1, 8, 128>}, {transform_indices = @transform_4, window_bounds = array<i64: 1, 1, 8, 128>}, {transform_indices = @transform_5, window_bounds = array<i64: 1, 3, 8, 128>}, {transform_indices = @transform_6, window_bounds = array<i64: 1, 3, 8, 128>}, {transform_indices = @transform_7, window_bounds = array<i64: 1, 1, 1>}, {transform_indices = @transform_8, window_bounds = array<i64: 1, 1, 1>}, {transform_indices = @transform_9, window_bounds = array<i64: 1, 1, 1>}]} {
    %c0_i32 = arith.constant 0 : i32
    %0 = arith.cmpi eq, %arg2, %c0_i32 : i32
    %1 = arith.extui %0 : i1 to i32
    %c0_i32_0 = arith.constant 0 : i32
    %2 = arith.cmpi ne, %1, %c0_i32_0 : i32
    scf.if %2 {
      %cst_89 = arith.constant 0.000000e+00 : f32
      %143 = vector.broadcast %cst_89 : f32 to vector<8x128xf32>
      %c0_90 = arith.constant 0 : index
      %c0_91 = arith.constant 0 : index
      %144 = vector.load %arg13[%c0_90, %c0_91] : memref<8x128xf32, #tpu.memory_space<vmem>>, vector<8x128xf32>
      tpu.vector_store %arg13[%c0_90, %c0_91], %143 {strides = array<i32>} : memref<8x128xf32, #tpu.memory_space<vmem>>, vector<8x128xf32>,
      %cst_92 = arith.constant 0.000000e+00 : f32
      %145 = vector.broadcast %cst_92 : f32 to vector<8x128xf32>
      %c0_93 = arith.constant 0 : index
      %c0_94 = arith.constant 0 : index
      %146 = vector.load %arg14[%c0_93, %c0_94] : memref<8x128xf32, #tpu.memory_space<vmem>>, vector<8x128xf32>
      tpu.vector_store %arg14[%c0_93, %c0_94], %145 {strides = array<i32>} : memref<8x128xf32, #tpu.memory_space<vmem>>, vector<8x128xf32>,
      %cst_95 = arith.constant 0.000000e+00 : f32
      %147 = vector.broadcast %cst_95 : f32 to vector<8x128xf32>
      %c0_96 = arith.constant 0 : index
      %c0_97 = arith.constant 0 : index
      %148 = vector.load %arg15[%c0_96, %c0_97] : memref<8x128xf32, #tpu.memory_space<vmem>>, vector<8x128xf32>
      tpu.vector_store %arg15[%c0_96, %c0_97], %147 {strides = array<i32>} : memref<8x128xf32, #tpu.memory_space<vmem>>, vector<8x128xf32>,
    } else {
    }
    %c1_i32 = arith.constant 1 : i32
    %3 = arith.muli %arg0, %c1_i32 : i32
    %4 = arith.addi %3, %arg2 : i32
    %5 = tpu.iota {dimensions = array<i32: 0>} : vector<8x128xi32>
    %c8_i32 = arith.constant 8 : i32
    %6 = arith.muli %4, %c8_i32 : i32
    %7 = vector.broadcast %6 : i32 to vector<8x128xi32>
    %8 = arith.addi %5, %7 : vector<8x128xi32>
    %c4_i32 = arith.constant 4 : i32
    %9 = vector.broadcast %c4_i32 : i32 to vector<8x128xi32>
    %10 = arith.cmpi slt, %8, %9 : vector<8x128xi32>
    %c0 = arith.constant 0 : index
    %c0_1 = arith.constant 0 : index
    %c0_2 = arith.constant 0 : index
    %c0_3 = arith.constant 0 : index
    %11 = vector.load %arg6[%c0, %c0_1, %c0_2, %c0_3] : memref<1x1x8x128xf32, #tpu.memory_space<vmem>>, vector<1x1x8x128xf32>
    %12 = vector.shape_cast %11 : vector<1x1x8x128xf32> to vector<8x128xf32>
    %c0_4 = arith.constant 0 : index
    %c0_5 = arith.constant 0 : index
    %c0_6 = arith.constant 0 : index
    %c0_7 = arith.constant 0 : index
    %13 = vector.load %arg7[%c0_4, %c0_5, %c0_6, %c0_7] : memref<1x1x8x128xf32, #tpu.memory_space<vmem>>, vector<1x1x8x128xf32>
    %14 = vector.shape_cast %13 : vector<1x1x8x128xf32> to vector<8x128xf32>
    %15 = math.log %12 : vector<8x128xf32>
    %cst = arith.constant -1.000000e+02 : f32
    %16 = vector.broadcast %cst : f32 to vector<8x128xf32>
    %17 = arith.maximumf %15, %16 : vector<8x128xf32>
    %cst_8 = arith.constant 1.000000e+00 : f32
    %18 = vector.broadcast %cst_8 : f32 to vector<8x128xf32>
    %19 = arith.subf %18, %12 : vector<8x128xf32>
    %20 = math.log %19 : vector<8x128xf32>
    %cst_9 = arith.constant -1.000000e+02 : f32
    %21 = vector.broadcast %cst_9 : f32 to vector<8x128xf32>
    %22 = arith.maximumf %20, %21 : vector<8x128xf32>
    %23 = arith.mulf %14, %17 : vector<8x128xf32>
    %cst_10 = arith.constant 1.000000e+00 : f32
    %24 = vector.broadcast %cst_10 : f32 to vector<8x128xf32>
    %25 = arith.subf %24, %14 : vector<8x128xf32>
    %26 = arith.mulf %25, %22 : vector<8x128xf32>
    %27 = arith.addf %23, %26 : vector<8x128xf32>
    %cst_11 = arith.constant 0.000000e+00 : f32
    %28 = vector.broadcast %cst_11 : f32 to vector<8x128xf32>
    %29 = arith.subf %28, %27 : vector<8x128xf32>
    %c0_12 = arith.constant 0 : index
    %c0_13 = arith.constant 0 : index
    %30 = vector.load %arg14[%c0_12, %c0_13] : memref<8x128xf32, #tpu.memory_space<vmem>>, vector<8x128xf32>
    %cst_14 = arith.constant 0.000000e+00 : f32
    %31 = vector.broadcast %cst_14 : f32 to vector<8x128xf32>
    %32 = arith.select %10, %29, %31 : vector<8x128xi1>, vector<8x128xf32>
    %33 = arith.addf %30, %32 : vector<8x128xf32>
    %c0_15 = arith.constant 0 : index
    %c0_16 = arith.constant 0 : index
    %34 = vector.load %arg14[%c0_15, %c0_16] : memref<8x128xf32, #tpu.memory_space<vmem>>, vector<8x128xf32>
    tpu.vector_store %arg14[%c0_15, %c0_16], %33 {strides = array<i32>} : memref<8x128xf32, #tpu.memory_space<vmem>>, vector<8x128xf32>,
    %cst_17 = arith.constant 0.000000e+00 : f32
    %35 = vector.broadcast %cst_17 : f32 to vector<8x128xf32>
    %cst_18 = arith.constant 0.000000e+00 : f32
    %36 = vector.broadcast %cst_18 : f32 to vector<8x128xf32>
    %c0_19 = arith.constant 0 : index
    %c0_20 = arith.constant 0 : index
    %c0_21 = arith.constant 0 : index
    %c0_22 = arith.constant 0 : index
    %37 = vector.load %arg5[%c0_19, %c0_20, %c0_21, %c0_22] : memref<1x3x8x128xf32, #tpu.memory_space<vmem>>, vector<1x1x8x128xf32>
    %38 = vector.shape_cast %37 : vector<1x1x8x128xf32> to vector<8x128xf32>
    %39 = arith.mulf %38, %14 : vector<8x128xf32>
    %40 = arith.mulf %38, %12 : vector<8x128xf32>
    %c0_23 = arith.constant 0 : index
    %c0_24 = arith.constant 0 : index
    %c0_25 = arith.constant 0 : index
    %c0_26 = arith.constant 0 : index
    %41 = vector.load %arg3[%c0_23, %c0_24, %c0_25, %c0_26] : memref<1x3x8x128xf32, #tpu.memory_space<vmem>>, vector<1x1x8x128xf32>
    %42 = vector.shape_cast %41 : vector<1x1x8x128xf32> to vector<8x128xf32>
    %43 = arith.mulf %42, %12 : vector<8x128xf32>
    %44 = arith.subf %43, %39 : vector<8x128xf32>
    %45 = arith.mulf %44, %44 : vector<8x128xf32>
    %46 = arith.subf %43, %40 : vector<8x128xf32>
    %47 = math.absf %46 : vector<8x128xf32>
    %48 = arith.addf %45, %47 : vector<8x128xf32>
    %49 = arith.addf %35, %48 : vector<8x128xf32>
    %c0_27 = arith.constant 0 : index
    %c0_28 = arith.constant 0 : index
    %c0_29 = arith.constant 0 : index
    %c0_30 = arith.constant 0 : index
    %50 = vector.load %arg4[%c0_27, %c0_28, %c0_29, %c0_30] : memref<1x3x8x128xf32, #tpu.memory_space<vmem>>, vector<1x1x8x128xf32>
    %51 = vector.shape_cast %50 : vector<1x1x8x128xf32> to vector<8x128xf32>
    %52 = arith.mulf %51, %12 : vector<8x128xf32>
    %53 = arith.subf %52, %39 : vector<8x128xf32>
    %54 = arith.mulf %53, %53 : vector<8x128xf32>
    %55 = arith.subf %52, %40 : vector<8x128xf32>
    %56 = math.absf %55 : vector<8x128xf32>
    %57 = arith.addf %54, %56 : vector<8x128xf32>
    %58 = arith.addf %49, %57 : vector<8x128xf32>
    %c0_31 = arith.constant 0 : index
    %c0_32 = arith.constant 0 : index
    %c0_33 = arith.constant 0 : index
    %c0_34 = arith.constant 0 : index
    %59 = vector.load %arg8[%c0_31, %c0_32, %c0_33, %c0_34] : memref<1x3x8x128xf32, #tpu.memory_space<vmem>>, vector<1x1x8x128xf32>
    %60 = vector.shape_cast %59 : vector<1x1x8x128xf32> to vector<8x128xf32>
    %61 = arith.mulf %60, %12 : vector<8x128xf32>
    %c0_35 = arith.constant 0 : index
    %c0_36 = arith.constant 0 : index
    %c0_37 = arith.constant 0 : index
    %c0_38 = arith.constant 0 : index
    %62 = vector.load %arg9[%c0_35, %c0_36, %c0_37, %c0_38] : memref<1x3x8x128xf32, #tpu.memory_space<vmem>>, vector<1x1x8x128xf32>
    %63 = vector.shape_cast %62 : vector<1x1x8x128xf32> to vector<8x128xf32>
    %64 = arith.mulf %63, %14 : vector<8x128xf32>
    %65 = arith.subf %61, %64 : vector<8x128xf32>
    %66 = arith.mulf %65, %65 : vector<8x128xf32>
    %67 = arith.addf %36, %66 : vector<8x128xf32>
    %c0_39 = arith.constant 0 : index
    %c1 = arith.constant 1 : index
    %c0_40 = arith.constant 0 : index
    %c0_41 = arith.constant 0 : index
    %68 = vector.load %arg5[%c0_39, %c1, %c0_40, %c0_41] : memref<1x3x8x128xf32, #tpu.memory_space<vmem>>, vector<1x1x8x128xf32>
    %69 = vector.shape_cast %68 : vector<1x1x8x128xf32> to vector<8x128xf32>
    %70 = arith.mulf %69, %14 : vector<8x128xf32>
    %71 = arith.mulf %69, %12 : vector<8x128xf32>
    %c0_42 = arith.constant 0 : index
    %c1_43 = arith.constant 1 : index
    %c0_44 = arith.constant 0 : index
    %c0_45 = arith.constant 0 : index
    %72 = vector.load %arg3[%c0_42, %c1_43, %c0_44, %c0_45] : memref<1x3x8x128xf32, #tpu.memory_space<vmem>>, vector<1x1x8x128xf32>
    %73 = vector.shape_cast %72 : vector<1x1x8x128xf32> to vector<8x128xf32>
    %74 = arith.mulf %73, %12 : vector<8x128xf32>
    %75 = arith.subf %74, %70 : vector<8x128xf32>
    %76 = arith.mulf %75, %75 : vector<8x128xf32>
    %77 = arith.subf %74, %71 : vector<8x128xf32>
    %78 = math.absf %77 : vector<8x128xf32>
    %79 = arith.addf %76, %78 : vector<8x128xf32>
    %80 = arith.addf %58, %79 : vector<8x128xf32>
    %c0_46 = arith.constant 0 : index
    %c1_47 = arith.constant 1 : index
    %c0_48 = arith.constant 0 : index
    %c0_49 = arith.constant 0 : index
    %81 = vector.load %arg4[%c0_46, %c1_47, %c0_48, %c0_49] : memref<1x3x8x128xf32, #tpu.memory_space<vmem>>, vector<1x1x8x128xf32>
    %82 = vector.shape_cast %81 : vector<1x1x8x128xf32> to vector<8x128xf32>
    %83 = arith.mulf %82, %12 : vector<8x128xf32>
    %84 = arith.subf %83, %70 : vector<8x128xf32>
    %85 = arith.mulf %84, %84 : vector<8x128xf32>
    %86 = arith.subf %83, %71 : vector<8x128xf32>
    %87 = math.absf %86 : vector<8x128xf32>
    %88 = arith.addf %85, %87 : vector<8x128xf32>
    %89 = arith.addf %80, %88 : vector<8x128xf32>
    %c0_50 = arith.constant 0 : index
    %c1_51 = arith.constant 1 : index
    %c0_52 = arith.constant 0 : index
    %c0_53 = arith.constant 0 : index
    %90 = vector.load %arg8[%c0_50, %c1_51, %c0_52, %c0_53] : memref<1x3x8x128xf32, #tpu.memory_space<vmem>>, vector<1x1x8x128xf32>
    %91 = vector.shape_cast %90 : vector<1x1x8x128xf32> to vector<8x128xf32>
    %92 = arith.mulf %91, %12 : vector<8x128xf32>
    %c0_54 = arith.constant 0 : index
    %c1_55 = arith.constant 1 : index
    %c0_56 = arith.constant 0 : index
    %c0_57 = arith.constant 0 : index
    %93 = vector.load %arg9[%c0_54, %c1_55, %c0_56, %c0_57] : memref<1x3x8x128xf32, #tpu.memory_space<vmem>>, vector<1x1x8x128xf32>
    %94 = vector.shape_cast %93 : vector<1x1x8x128xf32> to vector<8x128xf32>
    %95 = arith.mulf %94, %14 : vector<8x128xf32>
    %96 = arith.subf %92, %95 : vector<8x128xf32>
    %97 = arith.mulf %96, %96 : vector<8x128xf32>
    %98 = arith.addf %67, %97 : vector<8x128xf32>
    %c0_58 = arith.constant 0 : index
    %c2 = arith.constant 2 : index
    %c0_59 = arith.constant 0 : index
    %c0_60 = arith.constant 0 : index
    %99 = vector.load %arg5[%c0_58, %c2, %c0_59, %c0_60] : memref<1x3x8x128xf32, #tpu.memory_space<vmem>>, vector<1x1x8x128xf32>
    %100 = vector.shape_cast %99 : vector<1x1x8x128xf32> to vector<8x128xf32>
    %101 = arith.mulf %100, %14 : vector<8x128xf32>
    %102 = arith.mulf %100, %12 : vector<8x128xf32>
    %c0_61 = arith.constant 0 : index
    %c2_62 = arith.constant 2 : index
    %c0_63 = arith.constant 0 : index
    %c0_64 = arith.constant 0 : index
    %103 = vector.load %arg3[%c0_61, %c2_62, %c0_63, %c0_64] : memref<1x3x8x128xf32, #tpu.memory_space<vmem>>, vector<1x1x8x128xf32>
    %104 = vector.shape_cast %103 : vector<1x1x8x128xf32> to vector<8x128xf32>
    %105 = arith.mulf %104, %12 : vector<8x128xf32>
    %106 = arith.subf %105, %101 : vector<8x128xf32>
    %107 = arith.mulf %106, %106 : vector<8x128xf32>
    %108 = arith.subf %105, %102 : vector<8x128xf32>
    %109 = math.absf %108 : vector<8x128xf32>
    %110 = arith.addf %107, %109 : vector<8x128xf32>
    %111 = arith.addf %89, %110 : vector<8x128xf32>
    %c0_65 = arith.constant 0 : index
    %c2_66 = arith.constant 2 : index
    %c0_67 = arith.constant 0 : index
    %c0_68 = arith.constant 0 : index
    %112 = vector.load %arg4[%c0_65, %c2_66, %c0_67, %c0_68] : memref<1x3x8x128xf32, #tpu.memory_space<vmem>>, vector<1x1x8x128xf32>
    %113 = vector.shape_cast %112 : vector<1x1x8x128xf32> to vector<8x128xf32>
    %114 = arith.mulf %113, %12 : vector<8x128xf32>
    %115 = arith.subf %114, %101 : vector<8x128xf32>
    %116 = arith.mulf %115, %115 : vector<8x128xf32>
    %117 = arith.subf %114, %102 : vector<8x128xf32>
    %118 = math.absf %117 : vector<8x128xf32>
    %119 = arith.addf %116, %118 : vector<8x128xf32>
    %120 = arith.addf %111, %119 : vector<8x128xf32>
    %c0_69 = arith.constant 0 : index
    %c2_70 = arith.constant 2 : index
    %c0_71 = arith.constant 0 : index
    %c0_72 = arith.constant 0 : index
    %121 = vector.load %arg8[%c0_69, %c2_70, %c0_71, %c0_72] : memref<1x3x8x128xf32, #tpu.memory_space<vmem>>, vector<1x1x8x128xf32>
    %122 = vector.shape_cast %121 : vector<1x1x8x128xf32> to vector<8x128xf32>
    %123 = arith.mulf %122, %12 : vector<8x128xf32>
    %c0_73 = arith.constant 0 : index
    %c2_74 = arith.constant 2 : index
    %c0_75 = arith.constant 0 : index
    %c0_76 = arith.constant 0 : index
    %124 = vector.load %arg9[%c0_73, %c2_74, %c0_75, %c0_76] : memref<1x3x8x128xf32, #tpu.memory_space<vmem>>, vector<1x1x8x128xf32>
    %125 = vector.shape_cast %124 : vector<1x1x8x128xf32> to vector<8x128xf32>
    %126 = arith.mulf %125, %14 : vector<8x128xf32>
    %127 = arith.subf %123, %126 : vector<8x128xf32>
    %128 = arith.mulf %127, %127 : vector<8x128xf32>
    %129 = arith.addf %98, %128 : vector<8x128xf32>
    %c0_77 = arith.constant 0 : index
    %c0_78 = arith.constant 0 : index
    %130 = vector.load %arg13[%c0_77, %c0_78] : memref<8x128xf32, #tpu.memory_space<vmem>>, vector<8x128xf32>
    %cst_79 = arith.constant 0.000000e+00 : f32
    %131 = vector.broadcast %cst_79 : f32 to vector<8x128xf32>
    %132 = arith.select %10, %120, %131 : vector<8x128xi1>, vector<8x128xf32>
    %133 = arith.addf %130, %132 : vector<8x128xf32>
    %c0_80 = arith.constant 0 : index
    %c0_81 = arith.constant 0 : index
    %134 = vector.load %arg13[%c0_80, %c0_81] : memref<8x128xf32, #tpu.memory_space<vmem>>, vector<8x128xf32>
    tpu.vector_store %arg13[%c0_80, %c0_81], %133 {strides = array<i32>} : memref<8x128xf32, #tpu.memory_space<vmem>>, vector<8x128xf32>,
    %c0_82 = arith.constant 0 : index
    %c0_83 = arith.constant 0 : index
    %135 = vector.load %arg15[%c0_82, %c0_83] : memref<8x128xf32, #tpu.memory_space<vmem>>, vector<8x128xf32>
    %cst_84 = arith.constant 0.000000e+00 : f32
    %136 = vector.broadcast %cst_84 : f32 to vector<8x128xf32>
    %137 = arith.select %10, %129, %136 : vector<8x128xi1>, vector<8x128xf32>
    %138 = arith.addf %135, %137 : vector<8x128xf32>
    %c0_85 = arith.constant 0 : index
    %c0_86 = arith.constant 0 : index
    %139 = vector.load %arg15[%c0_85, %c0_86] : memref<8x128xf32, #tpu.memory_space<vmem>>, vector<8x128xf32>
    tpu.vector_store %arg15[%c0_85, %c0_86], %138 {strides = array<i32>} : memref<8x128xf32, #tpu.memory_space<vmem>>, vector<8x128xf32>,
    %c0_i32_87 = arith.constant 0 : i32
    %140 = arith.cmpi eq, %arg2, %c0_i32_87 : i32
    %141 = arith.extui %140 : i1 to i32
    %c0_i32_88 = arith.constant 0 : i32
    %142 = arith.cmpi ne, %141, %c0_i32_88 : i32
    scf.if %142 {
      %c0_89 = arith.constant 0 : index
      %c0_90 = arith.constant 0 : index
      %143 = vector.load %arg13[%c0_89, %c0_90] : memref<8x128xf32, #tpu.memory_space<vmem>>, vector<8x128xf32>
      %144 = vector.shape_cast %143 : vector<8x128xf32> to vector<1x8x128xf32>
      %cst_91 = arith.constant dense<0.000000e+00> : vector<1xf32>
      %145 = vector.multi_reduction <add>, %144, %cst_91 [1, 2] : vector<1x8x128xf32> to vector<1xf32>
      %146 = vector.shape_cast %145 : vector<1xf32> to vector<1x1x1xf32>
      %147 = vector.extract %146[0, 0, 0] : f32 from vector<1x1x1xf32>
      %148 = vector.broadcast %147 : f32 to vector<1x1xf32>
      %c0_92 = arith.constant 0 : index
      %c0_93 = arith.constant 0 : index
      %c0_94 = arith.constant 0 : index
      %149 = vector.load %arg10[%c0_92, %c0_93, %c0_94] : memref<1x1x1xf32, #tpu.memory_space<vmem>>, vector<1x1x1xf32>
      %150 = vector.shape_cast %149 : vector<1x1x1xf32> to vector<1x1xf32>
      %151 = vector.shape_cast %148 : vector<1x1xf32> to vector<1x1x1xf32>
      tpu.vector_store %arg10[%c0_92, %c0_93, %c0_94], %151 {strides = array<i32>} : memref<1x1x1xf32, #tpu.memory_space<vmem>>, vector<1x1x1xf32>,
      %c0_95 = arith.constant 0 : index
      %c0_96 = arith.constant 0 : index
      %152 = vector.load %arg14[%c0_95, %c0_96] : memref<8x128xf32, #tpu.memory_space<vmem>>, vector<8x128xf32>
      %153 = vector.shape_cast %152 : vector<8x128xf32> to vector<1x8x128xf32>
      %cst_97 = arith.constant dense<0.000000e+00> : vector<1xf32>
      %154 = vector.multi_reduction <add>, %153, %cst_97 [1, 2] : vector<1x8x128xf32> to vector<1xf32>
      %155 = vector.shape_cast %154 : vector<1xf32> to vector<1x1x1xf32>
      %156 = vector.extract %155[0, 0, 0] : f32 from vector<1x1x1xf32>
      %157 = vector.broadcast %156 : f32 to vector<1x1xf32>
      %c0_98 = arith.constant 0 : index
      %c0_99 = arith.constant 0 : index
      %c0_100 = arith.constant 0 : index
      %158 = vector.load %arg11[%c0_98, %c0_99, %c0_100] : memref<1x1x1xf32, #tpu.memory_space<vmem>>, vector<1x1x1xf32>
      %159 = vector.shape_cast %158 : vector<1x1x1xf32> to vector<1x1xf32>
      %160 = vector.shape_cast %157 : vector<1x1xf32> to vector<1x1x1xf32>
      tpu.vector_store %arg11[%c0_98, %c0_99, %c0_100], %160 {strides = array<i32>} : memref<1x1x1xf32, #tpu.memory_space<vmem>>, vector<1x1x1xf32>,
      %c0_101 = arith.constant 0 : index
      %c0_102 = arith.constant 0 : index
      %161 = vector.load %arg15[%c0_101, %c0_102] : memref<8x128xf32, #tpu.memory_space<vmem>>, vector<8x128xf32>
      %162 = vector.shape_cast %161 : vector<8x128xf32> to vector<1x8x128xf32>
      %cst_103 = arith.constant dense<0.000000e+00> : vector<1xf32>
      %163 = vector.multi_reduction <add>, %162, %cst_103 [1, 2] : vector<1x8x128xf32> to vector<1xf32>
      %164 = vector.shape_cast %163 : vector<1xf32> to vector<1x1x1xf32>
      %165 = vector.extract %164[0, 0, 0] : f32 from vector<1x1x1xf32>
      %166 = vector.broadcast %165 : f32 to vector<1x1xf32>
      %c0_104 = arith.constant 0 : index
      %c0_105 = arith.constant 0 : index
      %c0_106 = arith.constant 0 : index
      %167 = vector.load %arg12[%c0_104, %c0_105, %c0_106] : memref<1x1x1xf32, #tpu.memory_space<vmem>>, vector<1x1x1xf32>
      %168 = vector.shape_cast %167 : vector<1x1x1xf32> to vector<1x1xf32>
      %169 = vector.shape_cast %166 : vector<1x1xf32> to vector<1x1x1xf32>
      tpu.vector_store %arg12[%c0_104, %c0_105, %c0_106], %169 {strides = array<i32>} : memref<1x1x1xf32, #tpu.memory_space<vmem>>, vector<1x1x1xf32>,
    } else {
    }
    return
  }
  func.func @transform_0(%arg0: i32, %arg1: i32, %arg2: i32) -> (i32, i32, i32, i32) {
    %c1_i32 = arith.constant 1 : i32
    %0 = arith.muli %arg0, %c1_i32 : i32
    %1 = arith.addi %0, %arg2 : i32
    %c0_i32 = arith.constant 0 : i32
    %2 = arith.minsi %1, %c0_i32 : i32
    %c0_i32_0 = arith.constant 0 : i32
    %c0_i32_1 = arith.constant 0 : i32
    %c0_i32_2 = arith.constant 0 : i32
    return %arg1, %c0_i32_0, %2, %c0_i32_1 : i32, i32, i32, i32
  }
  func.func @transform_1(%arg0: i32, %arg1: i32, %arg2: i32) -> (i32, i32, i32, i32) {
    %c1_i32 = arith.constant 1 : i32
    %0 = arith.muli %arg0, %c1_i32 : i32
    %1 = arith.addi %0, %arg2 : i32
    %c0_i32 = arith.constant 0 : i32
    %2 = arith.minsi %1, %c0_i32 : i32
    %c0_i32_0 = arith.constant 0 : i32
    %c0_i32_1 = arith.constant 0 : i32
    %c0_i32_2 = arith.constant 0 : i32
    return %arg1, %c0_i32_0, %2, %c0_i32_1 : i32, i32, i32, i32
  }
  func.func @transform_2(%arg0: i32, %arg1: i32, %arg2: i32) -> (i32, i32, i32, i32) {
    %c1_i32 = arith.constant 1 : i32
    %0 = arith.muli %arg0, %c1_i32 : i32
    %1 = arith.addi %0, %arg2 : i32
    %c0_i32 = arith.constant 0 : i32
    %2 = arith.minsi %1, %c0_i32 : i32
    %c0_i32_0 = arith.constant 0 : i32
    %c0_i32_1 = arith.constant 0 : i32
    %c0_i32_2 = arith.constant 0 : i32
    return %arg1, %c0_i32_0, %2, %c0_i32_1 : i32, i32, i32, i32
  }
  func.func @transform_3(%arg0: i32, %arg1: i32, %arg2: i32) -> (i32, i32, i32, i32) {
    %c1_i32 = arith.constant 1 : i32
    %0 = arith.muli %arg0, %c1_i32 : i32
    %1 = arith.addi %0, %arg2 : i32
    %c0_i32 = arith.constant 0 : i32
    %2 = arith.minsi %1, %c0_i32 : i32
    %c0_i32_0 = arith.constant 0 : i32
    %c0_i32_1 = arith.constant 0 : i32
    %c0_i32_2 = arith.constant 0 : i32
    return %arg1, %c0_i32_0, %2, %c0_i32_1 : i32, i32, i32, i32
  }
  func.func @transform_4(%arg0: i32, %arg1: i32, %arg2: i32) -> (i32, i32, i32, i32) {
    %c1_i32 = arith.constant 1 : i32
    %0 = arith.muli %arg0, %c1_i32 : i32
    %1 = arith.addi %0, %arg2 : i32
    %c0_i32 = arith.constant 0 : i32
    %2 = arith.minsi %1, %c0_i32 : i32
    %c0_i32_0 = arith.constant 0 : i32
    %c0_i32_1 = arith.constant 0 : i32
    %c0_i32_2 = arith.constant 0 : i32
    return %arg1, %c0_i32_0, %2, %c0_i32_1 : i32, i32, i32, i32
  }
  func.func @transform_5(%arg0: i32, %arg1: i32, %arg2: i32) -> (i32, i32, i32, i32) {
    %c1_i32 = arith.constant 1 : i32
    %0 = arith.muli %arg0, %c1_i32 : i32
    %1 = arith.addi %0, %arg2 : i32
    %c0_i32 = arith.constant 0 : i32
    %2 = arith.minsi %1, %c0_i32 : i32
    %c0_i32_0 = arith.constant 0 : i32
    %c0_i32_1 = arith.constant 0 : i32
    %c0_i32_2 = arith.constant 0 : i32
    return %arg1, %c0_i32_0, %2, %c0_i32_1 : i32, i32, i32, i32
  }
  func.func @transform_6(%arg0: i32, %arg1: i32, %arg2: i32) -> (i32, i32, i32, i32) {
    %c1_i32 = arith.constant 1 : i32
    %0 = arith.muli %arg0, %c1_i32 : i32
    %1 = arith.addi %0, %arg2 : i32
    %c0_i32 = arith.constant 0 : i32
    %2 = arith.minsi %1, %c0_i32 : i32
    %c0_i32_0 = arith.constant 0 : i32
    %c0_i32_1 = arith.constant 0 : i32
    %c0_i32_2 = arith.constant 0 : i32
    return %arg1, %c0_i32_0, %2, %c0_i32_1 : i32, i32, i32, i32
  }
  func.func @transform_7(%arg0: i32, %arg1: i32, %arg2: i32) -> (i32, i32, i32) {
    %c2_i32 = arith.constant 2 : i32
    %0 = arith.muli %arg0, %c2_i32 : i32
    %1 = arith.addi %0, %arg1 : i32
    %c0_i32 = arith.constant 0 : i32
    %c0_i32_0 = arith.constant 0 : i32
    %c0_i32_1 = arith.constant 0 : i32
    return %1, %c0_i32, %c0_i32_0 : i32, i32, i32
  }
  func.func @transform_8(%arg0: i32, %arg1: i32, %arg2: i32) -> (i32, i32, i32) {
    %c2_i32 = arith.constant 2 : i32
    %0 = arith.muli %arg0, %c2_i32 : i32
    %1 = arith.addi %0, %arg1 : i32
    %c0_i32 = arith.constant 0 : i32
    %c0_i32_0 = arith.constant 0 : i32
    %c0_i32_1 = arith.constant 0 : i32
    return %1, %c0_i32, %c0_i32_0 : i32, i32, i32
  }
  func.func @transform_9(%arg0: i32, %arg1: i32, %arg2: i32) -> (i32, i32, i32) {
    %c2_i32 = arith.constant 2 : i32
    %0 = arith.muli %arg0, %c2_i32 : i32
    %1 = arith.addi %0, %arg1 : i32
    %c0_i32 = arith.constant 0 : i32
    %c0_i32_0 = arith.constant 0 : i32
    %c0_i32_1 = arith.constant 0 : i32
    return %1, %c0_i32, %c0_i32_0 : i32, i32, i32
  }
}

</mosaic_0001>

<llo_original>
// kernel: tpu_custom_call.1
$region0: #{tpu_custom_call.1}
  #allocation0 [shape = 'u32[]', space=smem, size = 0x4, offset = 0x4, fixed_abs, tag = 'smem constant byte address 0x4 - core index']
  #allocation1 [shape = 'u32[144,128]{1,0:T(1,128)}', space=vmem, size = 0x12000, scoped, tag = 'internal scratch']
  #allocation2 [shape = 'f32[8,128]{1,0:T(8,128)}', space=vmem, size = 0x1000, scoped, tag = 'scratch operand']
  #allocation3 [shape = 'f32[8,128]{1,0:T(8,128)}', space=vmem, size = 0x1000, scoped, tag = 'scratch operand']
  #allocation4 [shape = 'f32[8,128]{1,0:T(8,128)}', space=vmem, size = 0x1000, scoped, tag = 'scratch operand']
  %s0 = inlined_call_operand.hbm [shape: f32[2,3,8,128], index: 0, kind: input, shape index: {}]
  %s1 = inlined_call_operand.hbm [shape: f32[2,3,8,128], index: 1, kind: input, shape index: {}]
  %s2 = inlined_call_operand.hbm [shape: f32[2,3,8,128], index: 2, kind: input, shape index: {}]
  %s3 = inlined_call_operand.hbm [shape: f32[2,1,8,128], index: 3, kind: input, shape index: {}]
  %s4 = inlined_call_operand.hbm [shape: f32[2,1,8,128], index: 4, kind: input, shape index: {}]
  %s5 = inlined_call_operand.hbm [shape: f32[2,3,8,128], index: 5, kind: input, shape index: {}]
  %s6 = inlined_call_operand.hbm [shape: f32[2,3,8,128], index: 6, kind: input, shape index: {}]
  %s7 = inlined_call_operand.vmem [shape: f32[2,1,1], index: 7, kind: output, shape index: {0}]
  %s8 = inlined_call_operand.vmem [shape: f32[2,1,1], index: 8, kind: output, shape index: {1}]
  %s9 = inlined_call_operand.vmem [shape: f32[2,1,1], index: 9, kind: output, shape index: {2}]
  %10 = xla_tuple %s7, %s8, %s9
  %s11 = sld [smem:[#allocation0]]
  $region113: #{tpu_custom_call.1} parent=0
    _
  %s13 = ssub.s32 1, %s11
  %s14 = scalar_select 0, %s13, %s11
  $region1: #{tpu_custom_call.1} parent=0
    #allocation5 [shape = 'u8[24576]{0}', space=vmem, size = 0x6000, scoped, tag = 'input window, operand 0']
    #allocation6 [shape = 's32[2]{0}', space=sflag, size = 0x8, scoped, tag = 'scoped memory for tpu_custom_call.1']
    #allocation7 [shape = 'u8[24576]{0}', space=vmem, size = 0x6000, scoped, tag = 'input window, operand 1']
    #allocation8 [shape = 's32[2]{0}', space=sflag, size = 0x8, scoped, tag = 'scoped memory for tpu_custom_call.1']
    #allocation9 [shape = 'u8[24576]{0}', space=vmem, size = 0x6000, scoped, tag = 'input window, operand 2']
    #allocation10 [shape = 'u8[8192]{0}', space=vmem, size = 0x2000, scoped, tag = 'input window, operand 3']
    #allocation11 [shape = 's32[2]{0}', space=sflag, size = 0x8, scoped, tag = 'scoped memory for tpu_custom_call.1']
    #allocation12 [shape = 'u8[8192]{0}', space=vmem, size = 0x2000, scoped, tag = 'input window, operand 4']
    #allocation13 [shape = 'u8[24576]{0}', space=vmem, size = 0x6000, scoped, tag = 'input window, operand 5']
    #allocation14 [shape = 's32[2]{0}', space=sflag, size = 0x8, scoped, tag = 'scoped memory for tpu_custom_call.1']
    #allocation15 [shape = 'u8[24576]{0}', space=vmem, size = 0x6000, scoped, tag = 'input window, operand 6']
    %15 = vsyncpa [#allocation6], 0
    %s16 = scalar_lea.sflag [#allocation6], 1
    %17 = vsyncpa %s16, 0
    %18 = vsyncpa [#allocation8], 0
    %s19 = scalar_lea.sflag [#allocation8], 1
    %20 = vsyncpa %s19, 0
    %21 = vsyncpa [#allocation11], 0
    %s22 = scalar_lea.sflag [#allocation11], 1
    %23 = vsyncpa %s22, 0
    %24 = vsyncpa [#allocation14], 0
    %s25 = scalar_lea.sflag [#allocation14], 1
    %26 = vsyncpa %s25, 0
    loop: start=0, step=1, limit=4
    $region2: #{tpu_custom_call.1} parent=1 // loop_pre_header
      _
    $region3: #{tpu_custom_call.1} parent=1 // loop_header
      %s28 = sphi 0, %s32
      %p29 = scmp.ge.s32.totalorder %s28, 4
      %s35 = sphi 0, %s54
      %s36 = sphi 0, %s50
      %s37 = sphi 0, %s46
      %s38 = sphi 0, %s35
      %s39 = sphi 0, %s36
      %s40 = sphi 0, %s37
      %s41 = sphi 0, %s38
      %s42 = sphi 0, %s39
      %s43 = sphi 0, %s40
      %s65 = sphi 0, %s67
      %s68 = sphi 0, %s65
      %s69 = sphi 0, %s68
      %s85 = sphi 0, %s69
      %s99 = sphi 0, %s101
      %s102 = sphi 0, %s99
      %s103 = sphi 0, %s102
      %s119 = sphi 0, %s103
      %s133 = sphi 0, %s135
      %s136 = sphi 0, %s133
      %s137 = sphi 0, %s136
      %s153 = sphi 0, %s137
      %s167 = sphi 0, %s169
      %s170 = sphi 0, %s167
      %s171 = sphi 0, %s170
      %s187 = sphi 0, %s171
      %s201 = sphi 0, %s203
      %s204 = sphi 0, %s201
      %s205 = sphi 0, %s204
      %s221 = sphi 0, %s205
      %s235 = sphi 0, %s237
      %s238 = sphi 0, %s235
      %s239 = sphi 0, %s238
      %s255 = sphi 0, %s239
      %s269 = sphi 0, %s271
      %s272 = sphi 0, %s269
      %s273 = sphi 0, %s272
      %s289 = sphi 0, %s273
      %s299 = sphi 0, %s301
      %s302 = sphi 0, %s299
      %s303 = sphi 0, %s302
      %s319 = sphi 0, %s303
      %s329 = sphi 0, %s331
      %s332 = sphi 0, %s329
      %s333 = sphi 0, %s332
      %s349 = sphi 0, %s333
      %s359 = sphi 0, %s361
      %s362 = sphi 0, %s359
      %s363 = sphi 0, %s362
      %s379 = sphi 0, %s363
    $region4: #{tpu_custom_call.1} parent=1 // loop_header_branch
      %31 = sbr.rel (%p29) target = $region8
    $region5: #{tpu_custom_call.1} parent=1 // loop_body
      %s33 = ssub.s32 %s28, 1
      %s34 = ssub.s32 %s28, 2
      %s44 = sadd.s32 1, %s37
      %p45 = scmp.ge.s32.totalorder %s44, 1
      %s46 = scalar_select %p45, 0, %s44
      %s47 = sadd.s32 1, %s36
      %s48 = scalar_select %p45, %s47, %s36
      %p49 = scmp.ge.s32.totalorder %s48, 2
      %s50 = scalar_select %p49, 0, %s48
      %s51 = sadd.s32 1, %s35
      %s52 = scalar_select %p49, %s51, %s35
      %p53 = scmp.ge.s32.totalorder %s52, 1
      %s54 = scalar_select %p53, 0, %s52
      %s55 = sadd.s32 %s35, %s37
      %p56 = scmp.lt.s32.totalorder %s55, 0
      %s57 = scalar_select %p56, %s55, 0
      %s58 = sadd.s32 %s54, %s46
      %p59 = scmp.lt.s32.totalorder %s58, 0
      %s60 = scalar_select %p59, %s58, 0
      %s61 = ssub.s32 %s36, %s50
      %s62 = ssub.s32 %s57, %s60
      %s63 = sor.u32 %s61, %s62
      %p64 = scmp.eq.s32.totalorder %s63, 0
      %s66 = sadd.s32 %s65, 1
      %s67 = scalar_select %p64, %s65, %s66
      %p70 = pneg %p64
      %p71 = scmp.eq.s32.totalorder %s28, 1
      %p72 = por %p70, %p71
      %p73 = scmp.ne.s32.totalorder %s65, %s68
      %p74 = scmp.eq.s32.totalorder %s28, 0
      %p75 = por %p73, %p74
      %p76 = scmp.ne.s32.totalorder %s65, %s68
      %p77 = scmp.eq.s32.totalorder %s33, 1
      %p78 = por %p76, %p77
      %p79 = scmp.ne.s32.totalorder %s68, %s69
      %p80 = scmp.eq.s32.totalorder %s33, 0
      %p81 = por %p79, %p80
      %p82 = scmp.ne.s32.totalorder %s68, %s69
      %p83 = scmp.eq.s32.totalorder %s34, 1
      %p84 = por %p82, %p83
      %p86 = scmp.ne.s32.totalorder %s69, %s85
      %p87 = scmp.eq.s32.totalorder %s34, 0
      %p88 = por %p86, %p87
      %s89 = sadd.s32 %s35, %s37
      %p90 = scmp.lt.s32.totalorder %s89, 0
      %s91 = scalar_select %p90, %s89, 0
      %s92 = sadd.s32 %s54, %s46
      %p93 = scmp.lt.s32.totalorder %s92, 0
      %s94 = scalar_select %p93, %s92, 0
      %s95 = ssub.s32 %s36, %s50
      %s96 = ssub.s32 %s91, %s94
      %s97 = sor.u32 %s95, %s96
      %p98 = scmp.eq.s32.totalorder %s97, 0
      %s100 = sadd.s32 %s99, 1
      %s101 = scalar_select %p98, %s99, %s100
      %p104 = pneg %p98
      %p105 = scmp.eq.s32.totalorder %s28, 1
      %p106 = por %p104, %p105
      %p107 = scmp.ne.s32.totalorder %s99, %s102
      %p108 = scmp.eq.s32.totalorder %s28, 0
      %p109 = por %p107, %p108
      %p110 = scmp.ne.s32.totalorder %s99, %s102
      %p111 = scmp.eq.s32.totalorder %s33, 1
      %p112 = por %p110, %p111
      %p113 = scmp.ne.s32.totalorder %s102, %s103
      %p114 = scmp.eq.s32.totalorder %s33, 0
      %p115 = por %p113, %p114
      %p116 = scmp.ne.s32.totalorder %s102, %s103
      %p117 = scmp.eq.s32.totalorder %s34, 1
      %p118 = por %p116, %p117
      %p120 = scmp.ne.s32.totalorder %s103, %s119
      %p121 = scmp.eq.s32.totalorder %s34, 0
      %p122 = por %p120, %p121
      %s123 = sadd.s32 %s35, %s37
      %p124 = scmp.lt.s32.totalorder %s123, 0
      %s125 = scalar_select %p124, %s123, 0
      %s126 = sadd.s32 %s54, %s46
      %p127 = scmp.lt.s32.totalorder %s126, 0
      %s128 = scalar_select %p127, %s126, 0
      %s129 = ssub.s32 %s36, %s50
      %s130 = ssub.s32 %s125, %s128
      %s131 = sor.u32 %s129, %s130
      %p132 = scmp.eq.s32.totalorder %s131, 0
      %s134 = sadd.s32 %s133, 1
      %s135 = scalar_select %p132, %s133, %s134
      %p138 = pneg %p132
      %p139 = scmp.eq.s32.totalorder %s28, 1
      %p140 = por %p138, %p139
      %p141 = scmp.ne.s32.totalorder %s133, %s136
      %p142 = scmp.eq.s32.totalorder %s28, 0
      %p143 = por %p141, %p142
      %p144 = scmp.ne.s32.totalorder %s133, %s136
      %p145 = scmp.eq.s32.totalorder %s33, 1
      %p146 = por %p144, %p145
      %p147 = scmp.ne.s32.totalorder %s136, %s137
      %p148 = scmp.eq.s32.totalorder %s33, 0
      %p149 = por %p147, %p148
      %p150 = scmp.ne.s32.totalorder %s136, %s137
      %p151 = scmp.eq.s32.totalorder %s34, 1
      %p152 = por %p150, %p151
      %p154 = scmp.ne.s32.totalorder %s137, %s153
      %p155 = scmp.eq.s32.totalorder %s34, 0
      %p156 = por %p154, %p155
      %s157 = sadd.s32 %s35, %s37
      %p158 = scmp.lt.s32.totalorder %s157, 0
      %s159 = scalar_select %p158, %s157, 0
      %s160 = sadd.s32 %s54, %s46
      %p161 = scmp.lt.s32.totalorder %s160, 0
      %s162 = scalar_select %p161, %s160, 0
      %s163 = ssub.s32 %s36, %s50
      %s164 = ssub.s32 %s159, %s162
      %s165 = sor.u32 %s163, %s164
      %p166 = scmp.eq.s32.totalorder %s165, 0
      %s168 = sadd.s32 %s167, 1
      %s169 = scalar_select %p166, %s167, %s168
      %p172 = pneg %p166
      %p173 = scmp.eq.s32.totalorder %s28, 1
      %p174 = por %p172, %p173
      %p175 = scmp.ne.s32.totalorder %s167, %s170
      %p176 = scmp.eq.s32.totalorder %s28, 0
      %p177 = por %p175, %p176
      %p178 = scmp.ne.s32.totalorder %s167, %s170
      %p179 = scmp.eq.s32.totalorder %s33, 1
      %p180 = por %p178, %p179
      %p181 = scmp.ne.s32.totalorder %s170, %s171
      %p182 = scmp.eq.s32.totalorder %s33, 0
      %p183 = por %p181, %p182
      %p184 = scmp.ne.s32.totalorder %s170, %s171
      %p185 = scmp.eq.s32.totalorder %s34, 1
      %p186 = por %p184, %p185
      %p188 = scmp.ne.s32.totalorder %s171, %s187
      %p189 = scmp.eq.s32.totalorder %s34, 0
      %p190 = por %p188, %p189
      %s191 = sadd.s32 %s35, %s37
      %p192 = scmp.lt.s32.totalorder %s191, 0
      %s193 = scalar_select %p192, %s191, 0
      %s194 = sadd.s32 %s54, %s46
      %p195 = scmp.lt.s32.totalorder %s194, 0
      %s196 = scalar_select %p195, %s194, 0
      %s197 = ssub.s32 %s36, %s50
      %s198 = ssub.s32 %s193, %s196
      %s199 = sor.u32 %s197, %s198
      %p200 = scmp.eq.s32.totalorder %s199, 0
      %s202 = sadd.s32 %s201, 1
      %s203 = scalar_select %p200, %s201, %s202
      %p206 = pneg %p200
      %p207 = scmp.eq.s32.totalorder %s28, 1
      %p208 = por %p206, %p207
      %p209 = scmp.ne.s32.totalorder %s201, %s204
      %p210 = scmp.eq.s32.totalorder %s28, 0
      %p211 = por %p209, %p210
      %p212 = scmp.ne.s32.totalorder %s201, %s204
      %p213 = scmp.eq.s32.totalorder %s33, 1
      %p214 = por %p212, %p213
      %p215 = scmp.ne.s32.totalorder %s204, %s205
      %p216 = scmp.eq.s32.totalorder %s33, 0
      %p217 = por %p215, %p216
      %p218 = scmp.ne.s32.totalorder %s204, %s205
      %p219 = scmp.eq.s32.totalorder %s34, 1
      %p220 = por %p218, %p219
      %p222 = scmp.ne.s32.totalorder %s205, %s221
      %p223 = scmp.eq.s32.totalorder %s34, 0
      %p224 = por %p222, %p223
      %s225 = sadd.s32 %s35, %s37
      %p226 = scmp.lt.s32.totalorder %s225, 0
      %s227 = scalar_select %p226, %s225, 0
      %s228 = sadd.s32 %s54, %s46
      %p229 = scmp.lt.s32.totalorder %s228, 0
      %s230 = scalar_select %p229, %s228, 0
      %s231 = ssub.s32 %s36, %s50
      %s232 = ssub.s32 %s227, %s230
      %s233 = sor.u32 %s231, %s232
      %p234 = scmp.eq.s32.totalorder %s233, 0
      %s236 = sadd.s32 %s235, 1
      %s237 = scalar_select %p234, %s235, %s236
      %p240 = pneg %p234
      %p241 = scmp.eq.s32.totalorder %s28, 1
      %p242 = por %p240, %p241
      %p243 = scmp.ne.s32.totalorder %s235, %s238
      %p244 = scmp.eq.s32.totalorder %s28, 0
      %p245 = por %p243, %p244
      %p246 = scmp.ne.s32.totalorder %s235, %s238
      %p247 = scmp.eq.s32.totalorder %s33, 1
      %p248 = por %p246, %p247
      %p249 = scmp.ne.s32.totalorder %s238, %s239
      %p250 = scmp.eq.s32.totalorder %s33, 0
      %p251 = por %p249, %p250
      %p252 = scmp.ne.s32.totalorder %s238, %s239
      %p253 = scmp.eq.s32.totalorder %s34, 1
      %p254 = por %p252, %p253
      %p256 = scmp.ne.s32.totalorder %s239, %s255
      %p257 = scmp.eq.s32.totalorder %s34, 0
      %p258 = por %p256, %p257
      %s259 = sadd.s32 %s35, %s37
      %p260 = scmp.lt.s32.totalorder %s259, 0
      %s261 = scalar_select %p260, %s259, 0
      %s262 = sadd.s32 %s54, %s46
      %p263 = scmp.lt.s32.totalorder %s262, 0
      %s264 = scalar_select %p263, %s262, 0
      %s265 = ssub.s32 %s36, %s50
      %s266 = ssub.s32 %s261, %s264
      %s267 = sor.u32 %s265, %s266
      %p268 = scmp.eq.s32.totalorder %s267, 0
      %s270 = sadd.s32 %s269, 1
      %s271 = scalar_select %p268, %s269, %s270
      %p274 = pneg %p268
      %p275 = scmp.eq.s32.totalorder %s28, 1
      %p276 = por %p274, %p275
      %p277 = scmp.ne.s32.totalorder %s269, %s272
      %p278 = scmp.eq.s32.totalorder %s28, 0
      %p279 = por %p277, %p278
      %p280 = scmp.ne.s32.totalorder %s269, %s272
      %p281 = scmp.eq.s32.totalorder %s33, 1
      %p282 = por %p280, %p281
      %p283 = scmp.ne.s32.totalorder %s272, %s273
      %p284 = scmp.eq.s32.totalorder %s33, 0
      %p285 = por %p283, %p284
      %p286 = scmp.ne.s32.totalorder %s272, %s273
      %p287 = scmp.eq.s32.totalorder %s34, 1
      %p288 = por %p286, %p287
      %p290 = scmp.ne.s32.totalorder %s273, %s289
      %p291 = scmp.eq.s32.totalorder %s34, 0
      %p292 = por %p290, %p291
      %s293 = smul.u32 %s35, 2
      %s294 = sadd.s32 %s293, %s36
      %s295 = smul.u32 %s54, 2
      %s296 = sadd.s32 %s295, %s50
      %s297 = ssub.s32 %s294, %s296
      %p298 = scmp.eq.s32.totalorder %s297, 0
      %s300 = sadd.s32 %s299, 1
      %s301 = scalar_select %p298, %s299, %s300
      %p304 = pneg %p298
      %p305 = scmp.eq.s32.totalorder %s28, 1
      %p306 = por %p304, %p305
      %p307 = scmp.ne.s32.totalorder %s299, %s302
      %p308 = scmp.eq.s32.totalorder %s28, 0
      %p309 = por %p307, %p308
      %p310 = scmp.ne.s32.totalorder %s299, %s302
      %p311 = scmp.eq.s32.totalorder %s33, 1
      %p312 = por %p310, %p311
      %p313 = scmp.ne.s32.totalorder %s302, %s303
      %p314 = scmp.eq.s32.totalorder %s33, 0
      %p315 = por %p313, %p314
      %p316 = scmp.ne.s32.totalorder %s302, %s303
      %p317 = scmp.eq.s32.totalorder %s34, 1
      %p318 = por %p316, %p317
      %p320 = scmp.ne.s32.totalorder %s303, %s319
      %p321 = scmp.eq.s32.totalorder %s34, 0
      %p322 = por %p320, %p321
      %s323 = smul.u32 %s35, 2
      %s324 = sadd.s32 %s323, %s36
      %s325 = smul.u32 %s54, 2
      %s326 = sadd.s32 %s325, %s50
      %s327 = ssub.s32 %s324, %s326
      %p328 = scmp.eq.s32.totalorder %s327, 0
      %s330 = sadd.s32 %s329, 1
      %s331 = scalar_select %p328, %s329, %s330
      %p334 = pneg %p328
      %p335 = scmp.eq.s32.totalorder %s28, 1
      %p336 = por %p334, %p335
      %p337 = scmp.ne.s32.totalorder %s329, %s332
      %p338 = scmp.eq.s32.totalorder %s28, 0
      %p339 = por %p337, %p338
      %p340 = scmp.ne.s32.totalorder %s329, %s332
      %p341 = scmp.eq.s32.totalorder %s33, 1
      %p342 = por %p340, %p341
      %p343 = scmp.ne.s32.totalorder %s332, %s333
      %p344 = scmp.eq.s32.totalorder %s33, 0
      %p345 = por %p343, %p344
      %p346 = scmp.ne.s32.totalorder %s332, %s333
      %p347 = scmp.eq.s32.totalorder %s34, 1
      %p348 = por %p346, %p347
      %p350 = scmp.ne.s32.totalorder %s333, %s349
      %p351 = scmp.eq.s32.totalorder %s34, 0
      %p352 = por %p350, %p351
      %s353 = smul.u32 %s35, 2
      %s354 = sadd.s32 %s353, %s36
      %s355 = smul.u32 %s54, 2
      %s356 = sadd.s32 %s355, %s50
      %s357 = ssub.s32 %s354, %s356
      %p358 = scmp.eq.s32.totalorder %s357, 0
      %s360 = sadd.s32 %s359, 1
      %s361 = scalar_select %p358, %s359, %s360
      %p364 = pneg %p358
      %p365 = scmp.eq.s32.totalorder %s28, 1
      %p366 = por %p364, %p365
      %p367 = scmp.ne.s32.totalorder %s359, %s362
      %p368 = scmp.eq.s32.totalorder %s28, 0
      %p369 = por %p367, %p368
      %p370 = scmp.ne.s32.totalorder %s359, %s362
      %p371 = scmp.eq.s32.totalorder %s33, 1
      %p372 = por %p370, %p371
      %p373 = scmp.ne.s32.totalorder %s362, %s363
      %p374 = scmp.eq.s32.totalorder %s33, 0
      %p375 = por %p373, %p374
      %p376 = scmp.ne.s32.totalorder %s362, %s363
      %p377 = scmp.eq.s32.totalorder %s34, 1
      %p378 = por %p376, %p377
      %p380 = scmp.ne.s32.totalorder %s363, %s379
      %p381 = scmp.eq.s32.totalorder %s34, 0
      %p382 = por %p380, %p381
      %p383 = scmp.le.s32.totalorder 1, %s28
      %p384 = scmp.lt.s32.totalorder %s28, 3
      %p385 = pnand %p383, %p384
      %p386 = pneg %p385
      // Predicated region
      $region9: #{tpu_custom_call.1} parent=5 // pred_check
        _
      $region10: #{tpu_custom_call.1} parent=5 // pred_check_branch
        %388 = sbr.rel (%p385) target = $region12
      $region11: #{tpu_custom_call.1} parent=5 // pred_region
        %s389 = ssub.s32 %s28, 1
      $region12: #{tpu_custom_call.1} parent=5 // pred_fallthru
        _
      %p390 = scmp.lt.s32.totalorder %s28, 2
      // Predicated region
      $region13: #{tpu_custom_call.1} parent=5 // pred_check
        %p391 = pneg %p390
      $region14: #{tpu_custom_call.1} parent=5 // pred_check_branch
        %393 = sbr.rel (%p391) target = $region16
      $region15: #{tpu_custom_call.1} parent=5 // pred_region
        // Predicated region
        $region17: #{tpu_custom_call.1} parent=15 // pred_check
          %p394 = pneg %p75
        $region18: #{tpu_custom_call.1} parent=15 // pred_check_branch
          %396 = sbr.rel (%p394) target = $region20
        $region19: #{tpu_custom_call.1} parent=15 // pred_region
          %s397 = sand.u32 %s65, 1
          %s398 = scalar_lea.sflag [#allocation6], %s397
          %s399 = sand.u32 %s65, 1
          %s400 = smul.addr %s399, 24
          %s401 = scalar_lea.vmem [#allocation5], %s400
          %s402 = sadd.s32 %s35, %s37
          %p403 = scmp.lt.s32.totalorder %s402, 0
          %s404 = scalar_select %p403, %s402, 0
          %s406 = ssub.s32 384, 384
          %407 = vsyncadd %s398, %s406
          %s408 = smul.addr %s36, 3
          %s409 = sadd.s32 %s404, %s408
          %s410 = smul.addr %s409, 128
          %s411 = scalar_lea.hbm %s0, %s410
          %s412 = sshll.u32 %s401, 4
          %s413 = int_to_ptr.vmem [resolvable:$true] %s412
          %418 = dma.hbm_to_vmem [thread:$0]  %s411, 384, %s413, %s398, 128, 128, 8
        $region20: #{tpu_custom_call.1} parent=15 // pred_fallthru
          _
        // Predicated region
        $region21: #{tpu_custom_call.1} parent=15 // pred_check
          %p419 = pneg %p109
        $region22: #{tpu_custom_call.1} parent=15 // pred_check_branch
          %421 = sbr.rel (%p419) target = $region24
        $region23: #{tpu_custom_call.1} parent=15 // pred_region
          %s422 = sand.u32 %s28, 1
          %s423 = scalar_lea.sflag [#allocation8], %s422
          %s424 = sand.u32 %s99, 1
          %s425 = smul.addr %s424, 24
          %s426 = scalar_lea.vmem [#allocation7], %s425
          %s427 = sadd.s32 %s35, %s37
          %p428 = scmp.lt.s32.totalorder %s427, 0
          %s429 = scalar_select %p428, %s427, 0
          %s431 = ssub.s32 384, 384
          %432 = vsyncadd %s423, %s431
          %s433 = smul.addr %s36, 3
          %s434 = sadd.s32 %s429, %s433
          %s435 = smul.addr %s434, 128
          %s436 = scalar_lea.hbm %s1, %s435
          %s437 = sshll.u32 %s426, 4
          %s438 = int_to_ptr.vmem [resolvable:$true] %s437
          %443 = dma.hbm_to_vmem [thread:$0]  %s436, 384, %s438, %s423, 128, 128, 8
        $region24: #{tpu_custom_call.1} parent=15 // pred_fallthru
          _
        // Predicated region
        $region25: #{tpu_custom_call.1} parent=15 // pred_check
          %p444 = pneg %p143
        $region26: #{tpu_custom_call.1} parent=15 // pred_check_branch
          %446 = sbr.rel (%p444) target = $region28
        $region27: #{tpu_custom_call.1} parent=15 // pred_region
          %s447 = sand.u32 %s28, 1
          %s448 = scalar_lea.sflag [#allocation8], %s447
          %s449 = sand.u32 %s133, 1
          %s450 = smul.addr %s449, 24
          %s451 = scalar_lea.vmem [#allocation9], %s450
          %s452 = sadd.s32 %s35, %s37
          %p453 = scmp.lt.s32.totalorder %s452, 0
          %s454 = scalar_select %p453, %s452, 0
          %s456 = ssub.s32 384, 384
          %457 = vsyncadd %s448, %s456
          %s458 = smul.addr %s36, 3
          %s459 = sadd.s32 %s454, %s458
          %s460 = smul.addr %s459, 128
          %s461 = scalar_lea.hbm %s2, %s460
          %s462 = sshll.u32 %s451, 4
          %s463 = int_to_ptr.vmem [resolvable:$true] %s462
          %468 = dma.hbm_to_vmem [thread:$0]  %s461, 384, %s463, %s448, 128, 128, 8
        $region28: #{tpu_custom_call.1} parent=15 // pred_fallthru
          _
        // Predicated region
        $region29: #{tpu_custom_call.1} parent=15 // pred_check
          %p469 = pneg %p177
        $region30: #{tpu_custom_call.1} parent=15 // pred_check_branch
          %471 = sbr.rel (%p469) target = $region32
        $region31: #{tpu_custom_call.1} parent=15 // pred_region
          %s472 = sand.u32 %s28, 1
          %s473 = scalar_lea.sflag [#allocation11], %s472
          %s474 = sand.u32 %s167, 1
          %s475 = smul.addr %s474, 8
          %s476 = scalar_lea.vmem [#allocation10], %s475
          %s477 = sadd.s32 %s35, %s37
          %p478 = scmp.lt.s32.totalorder %s477, 0
          %s479 = scalar_select %p478, %s477, 0
          %s481 = ssub.s32 128, 128
          %482 = vsyncadd %s473, %s481
          %s483 = sadd.s32 %s479, %s36
          %s484 = smul.addr %s483, 128
          %s485 = scalar_lea.hbm %s3, %s484
          %s487 = sshll.u32 %s476, 4
          %s488 = int_to_ptr.vmem [resolvable:$true] %s487
          %490 = dma.hbm_to_vmem [thread:$0]  %s485, 128, %s488, %s473
        $region32: #{tpu_custom_call.1} parent=15 // pred_fallthru
          _
        // Predicated region
        $region33: #{tpu_custom_call.1} parent=15 // pred_check
          %p491 = pneg %p211
        $region34: #{tpu_custom_call.1} parent=15 // pred_check_branch
          %493 = sbr.rel (%p491) target = $region36
        $region35: #{tpu_custom_call.1} parent=15 // pred_region
          %s494 = sand.u32 %s28, 1
          %s495 = scalar_lea.sflag [#allocation11], %s494
          %s496 = sand.u32 %s201, 1
          %s497 = smul.addr %s496, 8
          %s498 = scalar_lea.vmem [#allocation12], %s497
          %s499 = sadd.s32 %s35, %s37
          %p500 = scmp.lt.s32.totalorder %s499, 0
          %s501 = scalar_select %p500, %s499, 0
          %s503 = ssub.s32 128, 128
          %504 = vsyncadd %s495, %s503
          %s505 = sadd.s32 %s501, %s36
          %s506 = smul.addr %s505, 128
          %s507 = scalar_lea.hbm %s4, %s506
          %s509 = sshll.u32 %s498, 4
          %s510 = int_to_ptr.vmem [resolvable:$true] %s509
          %512 = dma.hbm_to_vmem [thread:$0]  %s507, 128, %s510, %s495
        $region36: #{tpu_custom_call.1} parent=15 // pred_fallthru
          _
        // Predicated region
        $region37: #{tpu_custom_call.1} parent=15 // pred_check
          %p513 = pneg %p245
        $region38: #{tpu_custom_call.1} parent=15 // pred_check_branch
          %515 = sbr.rel (%p513) target = $region40
        $region39: #{tpu_custom_call.1} parent=15 // pred_region
          %s516 = sand.u32 %s28, 1
          %s517 = scalar_lea.sflag [#allocation14], %s516
          %s518 = sand.u32 %s235, 1
          %s519 = smul.addr %s518, 24
          %s520 = scalar_lea.vmem [#allocation13], %s519
          %s521 = sadd.s32 %s35, %s37
          %p522 = scmp.lt.s32.totalorder %s521, 0
          %s523 = scalar_select %p522, %s521, 0
          %s525 = ssub.s32 384, 384
          %526 = vsyncadd %s517, %s525
          %s527 = smul.addr %s36, 3
          %s528 = sadd.s32 %s523, %s527
          %s529 = smul.addr %s528, 128
          %s530 = scalar_lea.hbm %s5, %s529
          %s531 = sshll.u32 %s520, 4
          %s532 = int_to_ptr.vmem [resolvable:$true] %s531
          %537 = dma.hbm_to_vmem [thread:$0]  %s530, 384, %s532, %s517, 128, 128, 8
        $region40: #{tpu_custom_call.1} parent=15 // pred_fallthru
          _
        // Predicated region
        $region41: #{tpu_custom_call.1} parent=15 // pred_check
          %p538 = pneg %p279
        $region42: #{tpu_custom_call.1} parent=15 // pred_check_branch
          %540 = sbr.rel (%p538) target = $region44
        $region43: #{tpu_custom_call.1} parent=15 // pred_region
          %s541 = sand.u32 %s28, 1
          %s542 = scalar_lea.sflag [#allocation14], %s541
          %s543 = sand.u32 %s269, 1
          %s544 = smul.addr %s543, 24
          %s545 = scalar_lea.vmem [#allocation15], %s544
          %s546 = sadd.s32 %s35, %s37
          %p547 = scmp.lt.s32.totalorder %s546, 0
          %s548 = scalar_select %p547, %s546, 0
          %s550 = ssub.s32 384, 384
          %551 = vsyncadd %s542, %s550
          %s552 = smul.addr %s36, 3
          %s553 = sadd.s32 %s548, %s552
          %s554 = smul.addr %s553, 128
          %s555 = scalar_lea.hbm %s6, %s554
          %s556 = sshll.u32 %s545, 4
          %s557 = int_to_ptr.vmem [resolvable:$true] %s556
          %562 = dma.hbm_to_vmem [thread:$0]  %s555, 384, %s557, %s542, 128, 128, 8
        $region44: #{tpu_custom_call.1} parent=15 // pred_fallthru
          _
      $region16: #{tpu_custom_call.1} parent=5 // pred_fallthru
        _
      %p563 = scmp.le.s32.totalorder 1, %s28
      %p564 = scmp.lt.s32.totalorder %s28, 3
      %p565 = pnand %p563, %p564
      %p566 = pneg %p565
      // Predicated region
      $region45: #{tpu_custom_call.1} parent=5 // pred_check
        _
      $region46: #{tpu_custom_call.1} parent=5 // pred_check_branch
        %568 = sbr.rel (%p565) target = $region48
      $region47: #{tpu_custom_call.1} parent=5 // pred_region
        %s569 = ssub.s32 %s28, 1
        %s570 = sand.u32 %s68, 1
        %s571 = scalar_lea.sflag [#allocation6], %s570
        %s572 = sand.u32 %s68, 1
        %s573 = smul.addr %s572, 24
        %s574 = scalar_lea.vmem [#allocation5], %s573
        // Predicated region
        $region49: #{tpu_custom_call.1} parent=47 // pred_check
          %p575 = pneg %p81
        $region50: #{tpu_custom_call.1} parent=47 // pred_check_branch
          %577 = sbr.rel (%p575) target = $region52
        $region51: #{tpu_custom_call.1} parent=47 // pred_region
          %578 = dma.done %s571, 384
        $region52: #{tpu_custom_call.1} parent=47 // pred_fallthru
          _
        %s579 = sand.u32 %s33, 1
        %s580 = scalar_lea.sflag [#allocation8], %s579
        %s581 = sand.u32 %s102, 1
        %s582 = smul.addr %s581, 24
        %s583 = scalar_lea.vmem [#allocation7], %s582
        // Predicated region
        $region53: #{tpu_custom_call.1} parent=47 // pred_check
          %p584 = pneg %p115
        $region54: #{tpu_custom_call.1} parent=47 // pred_check_branch
          %586 = sbr.rel (%p584) target = $region56
        $region55: #{tpu_custom_call.1} parent=47 // pred_region
          %587 = dma.done %s580, 384
        $region56: #{tpu_custom_call.1} parent=47 // pred_fallthru
          _
        %s588 = sand.u32 %s33, 1
        %s589 = scalar_lea.sflag [#allocation8], %s588
        %s590 = sand.u32 %s136, 1
        %s591 = smul.addr %s590, 24
        %s592 = scalar_lea.vmem [#allocation9], %s591
        // Predicated region
        $region57: #{tpu_custom_call.1} parent=47 // pred_check
          %p593 = pneg %p149
        $region58: #{tpu_custom_call.1} parent=47 // pred_check_branch
          %595 = sbr.rel (%p593) target = $region60
        $region59: #{tpu_custom_call.1} parent=47 // pred_region
          %596 = dma.done %s589, 384
        $region60: #{tpu_custom_call.1} parent=47 // pred_fallthru
          _
        %s597 = sand.u32 %s33, 1
        %s598 = scalar_lea.sflag [#allocation11], %s597
        %s599 = sand.u32 %s170, 1
        %s600 = smul.addr %s599, 8
        %s601 = scalar_lea.vmem [#allocation10], %s600
        // Predicated region
        $region61: #{tpu_custom_call.1} parent=47 // pred_check
          %p602 = pneg %p183
        $region62: #{tpu_custom_call.1} parent=47 // pred_check_branch
          %604 = sbr.rel (%p602) target = $region64
        $region63: #{tpu_custom_call.1} parent=47 // pred_region
          %605 = dma.done %s598, 128
        $region64: #{tpu_custom_call.1} parent=47 // pred_fallthru
          _
        %s606 = sand.u32 %s33, 1
        %s607 = scalar_lea.sflag [#allocation11], %s606
        %s608 = sand.u32 %s204, 1
        %s609 = smul.addr %s608, 8
        %s610 = scalar_lea.vmem [#allocation12], %s609
        // Predicated region
        $region65: #{tpu_custom_call.1} parent=47 // pred_check
          %p611 = pneg %p217
        $region66: #{tpu_custom_call.1} parent=47 // pred_check_branch
          %613 = sbr.rel (%p611) target = $region68
        $region67: #{tpu_custom_call.1} parent=47 // pred_region
          %614 = dma.done %s607, 128
        $region68: #{tpu_custom_call.1} parent=47 // pred_fallthru
          _
        %s615 = sand.u32 %s33, 1
        %s616 = scalar_lea.sflag [#allocation14], %s615
        %s617 = sand.u32 %s238, 1
        %s618 = smul.addr %s617, 24
        %s619 = scalar_lea.vmem [#allocation13], %s618
        // Predicated region
        $region69: #{tpu_custom_call.1} parent=47 // pred_check
          %p620 = pneg %p251
        $region70: #{tpu_custom_call.1} parent=47 // pred_check_branch
          %622 = sbr.rel (%p620) target = $region72
        $region71: #{tpu_custom_call.1} parent=47 // pred_region
          %623 = dma.done %s616, 384
        $region72: #{tpu_custom_call.1} parent=47 // pred_fallthru
          _
        %s624 = sand.u32 %s33, 1
        %s625 = scalar_lea.sflag [#allocation14], %s624
        %s626 = sand.u32 %s272, 1
        %s627 = smul.addr %s626, 24
        %s628 = scalar_lea.vmem [#allocation15], %s627
        // Predicated region
        $region73: #{tpu_custom_call.1} parent=47 // pred_check
          %p629 = pneg %p285
        $region74: #{tpu_custom_call.1} parent=47 // pred_check_branch
          %631 = sbr.rel (%p629) target = $region76
        $region75: #{tpu_custom_call.1} parent=47 // pred_region
          %632 = dma.done %s625, 384
        $region76: #{tpu_custom_call.1} parent=47 // pred_fallthru
          _
        %s633 = sand.u32 %s68, 1
        %s634 = scalar_lea.sflag [#allocation6], %s633
        %s635 = sand.u32 %s68, 1
        %s636 = smul.addr %s635, 24
        %s637 = scalar_lea.vmem [#allocation5], %s636
        %p638 = pneg %p81
        %p639 = pneg %p78
        %s640 = sand.u32 %s33, 1
        %s641 = scalar_lea.sflag [#allocation8], %s640
        %s642 = sand.u32 %s102, 1
        %s643 = smul.addr %s642, 24
        %s644 = scalar_lea.vmem [#allocation7], %s643
        %p645 = pneg %p115
        %p646 = pneg %p112
        %s647 = sand.u32 %s33, 1
        %s648 = scalar_lea.sflag [#allocation8], %s647
        %s649 = sand.u32 %s136, 1
        %s650 = smul.addr %s649, 24
        %s651 = scalar_lea.vmem [#allocation9], %s650
        %p652 = pneg %p149
        %p653 = pneg %p146
        %s654 = sand.u32 %s33, 1
        %s655 = scalar_lea.sflag [#allocation11], %s654
        %s656 = sand.u32 %s170, 1
        %s657 = smul.addr %s656, 8
        %s658 = scalar_lea.vmem [#allocation10], %s657
        %p659 = pneg %p183
        %p660 = pneg %p180
        %s661 = sand.u32 %s33, 1
        %s662 = scalar_lea.sflag [#allocation11], %s661
        %s663 = sand.u32 %s204, 1
        %s664 = smul.addr %s663, 8
        %s665 = scalar_lea.vmem [#allocation12], %s664
        %p666 = pneg %p217
        %p667 = pneg %p214
        %s668 = sand.u32 %s33, 1
        %s669 = scalar_lea.sflag [#allocation14], %s668
        %s670 = sand.u32 %s238, 1
        %s671 = smul.addr %s670, 24
        %s672 = scalar_lea.vmem [#allocation13], %s671
        %p673 = pneg %p251
        %p674 = pneg %p248
        %s675 = sand.u32 %s33, 1
        %s676 = scalar_lea.sflag [#allocation14], %s675
        %s677 = sand.u32 %s272, 1
        %s678 = smul.addr %s677, 24
        %s679 = scalar_lea.vmem [#allocation15], %s678
        %p680 = pneg %p285
        %p681 = pneg %p282
        %p682 = pneg %p315
        %p683 = pneg %p312
        %s684 = smul.u32 %s38, 2
        %s685 = sadd.s32 %s684, %s39
        %p686 = scmp.lt.s32.totalorder %s685, 1
        %s687 = scalar_select %p686, %s685, 1
        %s688 = scalar_lea.vmem %s7, %s687
        %p689 = pneg %p345
        %p690 = pneg %p342
        %s691 = smul.u32 %s38, 2
        %s692 = sadd.s32 %s691, %s39
        %p693 = scmp.lt.s32.totalorder %s692, 1
        %s694 = scalar_select %p693, %s692, 1
        %s695 = scalar_lea.vmem %s8, %s694
        %p696 = pneg %p375
        %p697 = pneg %p372
        %s698 = smul.u32 %s38, 2
        %s699 = sadd.s32 %s698, %s39
        %p700 = scmp.lt.s32.totalorder %s699, 1
        %s701 = scalar_select %p700, %s699, 1
        %s702 = scalar_lea.vmem %s9, %s701
        %s703 = sadd.s32 %s38, %s40
        %p704 = scmp.lt.s32.totalorder %s703, 0
        %s705 = scalar_select %p704, %s703, 0
        %s706 = sadd.s32 %s38, %s40
        %p707 = scmp.lt.s32.totalorder %s706, 0
        %s708 = scalar_select %p707, %s706, 0
        %s709 = sadd.s32 %s38, %s40
        %p710 = scmp.lt.s32.totalorder %s709, 0
        %s711 = scalar_select %p710, %s709, 0
        %s712 = sadd.s32 %s38, %s40
        %p713 = scmp.lt.s32.totalorder %s712, 0
        %s714 = scalar_select %p713, %s712, 0
        %s715 = sadd.s32 %s38, %s40
        %p716 = scmp.lt.s32.totalorder %s715, 0
        %s717 = scalar_select %p716, %s715, 0
        %s718 = sadd.s32 %s38, %s40
        %p719 = scmp.lt.s32.totalorder %s718, 0
        %s720 = scalar_select %p719, %s718, 0
        %s721 = sadd.s32 %s38, %s40
        %p722 = scmp.lt.s32.totalorder %s721, 0
        %s723 = scalar_select %p722, %s721, 0
        %s724 = smul.u32 %s38, 2
        %s725 = sadd.s32 %s724, %s39
        %p726 = scmp.lt.s32.totalorder %s725, 1
        %s727 = scalar_select %p726, %s725, 1
        %s728 = scalar_lea.vmem %s7, %s727
        %s729 = smul.u32 %s38, 2
        %s730 = sadd.s32 %s729, %s39
        %s731 = smul.u32 %s38, 2
        %s732 = sadd.s32 %s731, %s39
        %p733 = scmp.lt.s32.totalorder %s732, 1
        %s734 = scalar_select %p733, %s732, 1
        %s735 = scalar_lea.vmem %s8, %s734
        %s736 = smul.u32 %s38, 2
        %s737 = sadd.s32 %s736, %s39
        %s738 = smul.u32 %s38, 2
        %s739 = sadd.s32 %s738, %s39
        %p740 = scmp.lt.s32.totalorder %s739, 1
        %s741 = scalar_select %p740, %s739, 1
        %s742 = scalar_lea.vmem %s9, %s741
        %s743 = smul.u32 %s38, 2
        %s744 = sadd.s32 %s743, %s39
        %p745 = scmp.eq.s32.totalorder %s40, 0
        // Predicated region
        $region77: #{tpu_custom_call.1} parent=47 // pred_check
          %p746 = pneg %p745
        $region78: #{tpu_custom_call.1} parent=47 // pred_check_branch
          %748 = sbr.rel (%p746) target = $region80
        $region79: #{tpu_custom_call.1} parent=47 // pred_region
          %749 = vst [vmem:[#allocation2] sm:$0xff] 0.0
          %750 = vst [vmem:[#allocation3] sm:$0xff] 0.0
          %751 = vst [vmem:[#allocation4] sm:$0xff] 0.0
        $region80: #{tpu_custom_call.1} parent=47 // pred_fallthru
          _
        %s752 = sadd.s32 %s38, %s40
        %v753 = vlaneseq
        %v754 = vshrl.u32 %v753, 7
        %s755 = smul.u32 %s752, 8
        %v756 = vstv %s755
        %v757 = vadd.s32 %v754, %v756
        %vm758 = vcmp.lt.s32.totalorder %v757, 4
        %v759 = vld [vmem:[%s601] sm:$0xff]
        %v760 = vld [vmem:[%s610] sm:$0xff]
        %v761 = vlog2.pop %v759
        %v762 = vmul.f32 %v761, 0.6931472
        %v763 = vmax.f32 %v762, -100.0
        %v764 = vsub.f32 1.0, %v759
        %v765 = vlog2.pop %v764
        %v766 = vmul.f32 %v765, 0.6931472
        %v767 = vmax.f32 %v766, -100.0
        %v768 = vmul.f32 %v760, %v763
        %v769 = vsub.f32 1.0, %v760
        %v770 = vmul.f32 %v769, %v767
        %v771 = vadd.f32 %v768, %v770
        %v772 = vsub.f32 0.0, %v771
        %v773 = vld [vmem:[#allocation3] sm:$0xff]
        %v774 = vsel %vm758, %v772, 0.0
        %v775 = vadd.f32 %v773, %v774
        %776 = vst [vmem:[#allocation3] sm:$0xff] %v775
        %v777 = vld [vmem:[%s592] sm:$0xff]
        %v778 = vmul.f32 %v777, %v760
        %v779 = vmul.f32 %v777, %v759
        %v780 = vld [vmem:[%s574] sm:$0xff]
        %v781 = vmul.f32 %v780, %v759
        %v782 = vsub.f32 %v781, %v778
        %v783 = vmul.f32 %v782, %v782
        %v784 = vsub.f32 %v781, %v779
        %v785 = vand.u32 2147483647, %v784
        %v786 = vadd.f32 %v783, %v785
        %v787 = vadd.f32 %v786, 0.0
        %v788 = vld [vmem:[%s583] sm:$0xff]
        %v789 = vmul.f32 %v788, %v759
        %v790 = vsub.f32 %v789, %v778
        %v791 = vmul.f32 %v790, %v790
        %v792 = vsub.f32 %v789, %v779
        %v793 = vand.u32 2147483647, %v792
        %v794 = vadd.f32 %v791, %v793
        %v795 = vadd.f32 %v787, %v794
        %v796 = vld [vmem:[%s619] sm:$0xff]
        %v797 = vmul.f32 %v796, %v759
        %v798 = vld [vmem:[%s628] sm:$0xff]
        %v799 = vmul.f32 %v798, %v760
        %v800 = vsub.f32 %v797, %v799
        %v801 = vmul.f32 %v800, %v800
        %v802 = vadd.f32 %v801, 0.0
        %s803 = scalar_lea.vmem %s592, 8 [#allocation9]
        %v804 = vld [vmem:[%s803] sm:$0xff]
        %v805 = vmul.f32 %v804, %v760
        %v806 = vmul.f32 %v804, %v759
        %s807 = scalar_lea.vmem %s574, 8 [#allocation5]
        %v808 = vld [vmem:[%s807] sm:$0xff]
        %v809 = vmul.f32 %v808, %v759
        %v810 = vsub.f32 %v809, %v805
        %v811 = vmul.f32 %v810, %v810
        %v812 = vsub.f32 %v809, %v806
        %v813 = vand.u32 2147483647, %v812
        %v814 = vadd.f32 %v811, %v813
        %v815 = vadd.f32 %v795, %v814
        %s816 = scalar_lea.vmem %s583, 8 [#allocation7]
        %v817 = vld [vmem:[%s816] sm:$0xff]
        %v818 = vmul.f32 %v817, %v759
        %v819 = vsub.f32 %v818, %v805
        %v820 = vmul.f32 %v819, %v819
        %v821 = vsub.f32 %v818, %v806
        %v822 = vand.u32 2147483647, %v821
        %v823 = vadd.f32 %v820, %v822
        %v824 = vadd.f32 %v815, %v823
        %s825 = scalar_lea.vmem %s619, 8 [#allocation13]
        %v826 = vld [vmem:[%s825] sm:$0xff]
        %v827 = vmul.f32 %v826, %v759
        %s828 = scalar_lea.vmem %s628, 8 [#allocation15]
        %v829 = vld [vmem:[%s828] sm:$0xff]
        %v830 = vmul.f32 %v829, %v760
        %v831 = vsub.f32 %v827, %v830
        %v832 = vmul.f32 %v831, %v831
        %v833 = vadd.f32 %v802, %v832
        %s834 = scalar_lea.vmem %s592, 16 [#allocation9]
        %v835 = vld [vmem:[%s834] sm:$0xff]
        %v836 = vmul.f32 %v835, %v760
        %v837 = vmul.f32 %v835, %v759
        %s838 = scalar_lea.vmem %s574, 16 [#allocation5]
        %v839 = vld [vmem:[%s838] sm:$0xff]
        %v840 = vmul.f32 %v839, %v759
        %v841 = vsub.f32 %v840, %v836
        %v842 = vmul.f32 %v841, %v841
        %v843 = vsub.f32 %v840, %v837
        %v844 = vand.u32 2147483647, %v843
        %v845 = vadd.f32 %v842, %v844
        %v846 = vadd.f32 %v824, %v845
        %s847 = scalar_lea.vmem %s583, 16 [#allocation7]
        %v848 = vld [vmem:[%s847] sm:$0xff]
        %v849 = vmul.f32 %v848, %v759
        %v850 = vsub.f32 %v849, %v836
        %v851 = vmul.f32 %v850, %v850
        %v852 = vsub.f32 %v849, %v837
        %v853 = vand.u32 2147483647, %v852
        %v854 = vadd.f32 %v851, %v853
        %v855 = vadd.f32 %v846, %v854
        %s856 = scalar_lea.vmem %s619, 16 [#allocation13]
        %v857 = vld [vmem:[%s856] sm:$0xff]
        %v858 = vmul.f32 %v857, %v759
        %s859 = scalar_lea.vmem %s628, 16 [#allocation15]
        %v860 = vld [vmem:[%s859] sm:$0xff]
        %v861 = vmul.f32 %v860, %v760
        %v862 = vsub.f32 %v858, %v861
        %v863 = vmul.f32 %v862, %v862
        %v864 = vadd.f32 %v833, %v863
        %v865 = vld [vmem:[#allocation2] sm:$0xff]
        %v866 = vsel %vm758, %v855, 0.0
        %v867 = vadd.f32 %v865, %v866
        %868 = vst [vmem:[#allocation2] sm:$0xff] %v867
        %v869 = vld [vmem:[#allocation4] sm:$0xff]
        %v870 = vsel %vm758, %v864, 0.0
        %v871 = vadd.f32 %v869, %v870
        %872 = vst [vmem:[#allocation4] sm:$0xff] %v871
        // Predicated region
        $region81: #{tpu_custom_call.1} parent=47 // pred_check
          %p873 = pneg %p745
        $region82: #{tpu_custom_call.1} parent=47 // pred_check_branch
          %875 = sbr.rel (%p873) target = $region84
        $region83: #{tpu_custom_call.1} parent=47 // pred_region
          %v876 = vld [vmem:[#allocation2] sm:$0xff]
          %877 = vadd.xlane.f32.xlu0 %v876
          %v878 = vpop.xlane.xlu0 %877
          %v879 = vrot.slane %v878, 4
          %v880 = vadd.f32 %v878, %v879
          %v881 = vrot.slane %v880, 2
          %v882 = vadd.f32 %v880, %v881
          %v883 = vrot.slane %v882, 1
          %v884 = vadd.f32 %v882, %v883
          %s885 = vtos %v884
          %v886 = vstv %s885
          %vm887 = vcmask 0
          %888 = vst.msk [vmem:[%s728] sm:$0x1] %vm887, %v886
          %v889 = vld [vmem:[#allocation3] sm:$0xff]
          %890 = vadd.xlane.f32.xlu0 %v889
          %v891 = vpop.xlane.xlu0 %890
          %v892 = vrot.slane %v891, 4
          %v893 = vadd.f32 %v891, %v892
          %v894 = vrot.slane %v893, 2
          %v895 = vadd.f32 %v893, %v894
          %v896 = vrot.slane %v895, 1
          %v897 = vadd.f32 %v895, %v896
          %s898 = vtos %v897
          %v899 = vstv %s898
          %900 = vst.msk [vmem:[%s735] sm:$0x1] %vm887, %v899
          %v901 = vld [vmem:[#allocation4] sm:$0xff]
          %902 = vadd.xlane.f32.xlu0 %v901
          %v903 = vpop.xlane.xlu0 %902
          %v904 = vrot.slane %v903, 4
          %v905 = vadd.f32 %v903, %v904
          %v906 = vrot.slane %v905, 2
          %v907 = vadd.f32 %v905, %v906
          %v908 = vrot.slane %v907, 1
          %v909 = vadd.f32 %v907, %v908
          %s910 = vtos %v909
          %v911 = vstv %s910
          %912 = vst.msk [vmem:[%s742] sm:$0x1] %vm887, %v911
        $region84: #{tpu_custom_call.1} parent=47 // pred_fallthru
          _
        %s913 = smul.u32 %s38, 2
        %s914 = sadd.s32 %s913, %s39
        %p915 = scmp.lt.s32.totalorder %s914, 1
        %s916 = scalar_select %p915, %s914, 1
        %s917 = scalar_lea.vmem %s7, %s916
        %s918 = smul.u32 %s38, 2
        %s919 = sadd.s32 %s918, %s39
        %p920 = scmp.lt.s32.totalorder %s919, 1
        %s921 = scalar_select %p920, %s919, 1
        %s922 = scalar_lea.vmem %s8, %s921
        %s923 = smul.u32 %s38, 2
        %s924 = sadd.s32 %s923, %s39
        %p925 = scmp.lt.s32.totalorder %s924, 1
        %s926 = scalar_select %p925, %s924, 1
        %s927 = scalar_lea.vmem %s9, %s926
        // Predicated region
        $region85: #{tpu_custom_call.1} parent=47 // pred_check
          %p928 = pneg %p312
        $region86: #{tpu_custom_call.1} parent=47 // pred_check_branch
          %930 = sbr.rel (%p928) target = $region88
        $region87: #{tpu_custom_call.1} parent=47 // pred_region
          %s931 = smul.u32 %s38, 2
          %s932 = sadd.s32 %s931, %s39
        $region88: #{tpu_custom_call.1} parent=47 // pred_fallthru
          _
        // Predicated region
        $region89: #{tpu_custom_call.1} parent=47 // pred_check
          %p933 = pneg %p342
        $region90: #{tpu_custom_call.1} parent=47 // pred_check_branch
          %935 = sbr.rel (%p933) target = $region92
        $region91: #{tpu_custom_call.1} parent=47 // pred_region
          %s936 = smul.u32 %s38, 2
          %s937 = sadd.s32 %s936, %s39
        $region92: #{tpu_custom_call.1} parent=47 // pred_fallthru
          _
        // Predicated region
        $region93: #{tpu_custom_call.1} parent=47 // pred_check
          %p938 = pneg %p372
        $region94: #{tpu_custom_call.1} parent=47 // pred_check_branch
          %940 = sbr.rel (%p938) target = $region96
        $region95: #{tpu_custom_call.1} parent=47 // pred_region
          %s941 = smul.u32 %s38, 2
          %s942 = sadd.s32 %s941, %s39
        $region96: #{tpu_custom_call.1} parent=47 // pred_fallthru
          _
      $region48: #{tpu_custom_call.1} parent=5 // pred_fallthru
        _
      %p943 = scmp.le.s32.totalorder 2, %s28
      // Predicated region
      $region97: #{tpu_custom_call.1} parent=5 // pred_check
        %p944 = pneg %p943
      $region98: #{tpu_custom_call.1} parent=5 // pred_check_branch
        %946 = sbr.rel (%p944) target = $region100
      $region99: #{tpu_custom_call.1} parent=5 // pred_region
        %s947 = ssub.s32 %s28, 2
        // Predicated region
        $region101: #{tpu_custom_call.1} parent=99 // pred_check
          %p948 = pneg %p318
        $region102: #{tpu_custom_call.1} parent=99 // pred_check_branch
          %950 = sbr.rel (%p948) target = $region104
        $region103: #{tpu_custom_call.1} parent=99 // pred_region
          %s951 = smul.u32 %s41, 2
          %s952 = sadd.s32 %s951, %s42
          %p953 = scmp.lt.s32.totalorder %s952, 1
          %s954 = scalar_select %p953, %s952, 1
          %s955 = scalar_lea.vmem %s7, %s954
        $region104: #{tpu_custom_call.1} parent=99 // pred_fallthru
          _
        // Predicated region
        $region105: #{tpu_custom_call.1} parent=99 // pred_check
          %p956 = pneg %p348
        $region106: #{tpu_custom_call.1} parent=99 // pred_check_branch
          %958 = sbr.rel (%p956) target = $region108
        $region107: #{tpu_custom_call.1} parent=99 // pred_region
          %s959 = smul.u32 %s41, 2
          %s960 = sadd.s32 %s959, %s42
          %p961 = scmp.lt.s32.totalorder %s960, 1
          %s962 = scalar_select %p961, %s960, 1
          %s963 = scalar_lea.vmem %s8, %s962
        $region108: #{tpu_custom_call.1} parent=99 // pred_fallthru
          _
        // Predicated region
        $region109: #{tpu_custom_call.1} parent=99 // pred_check
          %p964 = pneg %p378
        $region110: #{tpu_custom_call.1} parent=99 // pred_check_branch
          %966 = sbr.rel (%p964) target = $region112
        $region111: #{tpu_custom_call.1} parent=99 // pred_region
          %s967 = smul.u32 %s41, 2
          %s968 = sadd.s32 %s967, %s42
          %p969 = scmp.lt.s32.totalorder %s968, 1
          %s970 = scalar_select %p969, %s968, 1
          %s971 = scalar_lea.vmem %s9, %s970
        $region112: #{tpu_custom_call.1} parent=99 // pred_fallthru
          _
      $region100: #{tpu_custom_call.1} parent=5 // pred_fallthru
        _
    $region6: #{tpu_custom_call.1} parent=1 // loop_footer
      %s32 = sadd.s32 1, %s28
    $region7: #{tpu_custom_call.1} parent=1 // loop_footer_branch
      %27 = sbr.rel target = $region3
    $region8: #{tpu_custom_call.1} parent=1 // loop_exit
      _
    %972 = vsyncpa [#allocation6], 1
    %s973 = scalar_lea.sflag [#allocation6], 1
    %974 = vsyncpa %s973, 1
    %975 = vsyncpa [#allocation8], 1
    %s976 = scalar_lea.sflag [#allocation8], 1
    %977 = vsyncpa %s976, 1
    %978 = vsyncpa [#allocation11], 1
    %s979 = scalar_lea.sflag [#allocation11], 1
    %980 = vsyncpa %s979, 1
    %981 = vsyncpa [#allocation14], 1
    %s982 = scalar_lea.sflag [#allocation14], 1
    %983 = vsyncpa %s982, 1

</llo_original>
